<compile_context>
chip_gen: v7x
topology: tpu7x:2x2x1
jax: 0.10.0
libtpu: 0.0.40
codegen_flags: <defaults>
</compile_context>

<pallas_src>
import functools

import jax
import jax.numpy as jnp
from jax.experimental import pallas as pl
from jax.experimental.pallas import tpu as pltpu


def msa_block_kernel(x_ref, gamma_ref, beta_ref, wqkv_ref, bqkv_ref,
                     wo_ref, bo_ref, out_ref, head_out_ref, *,
                     batches_per_block, seq_len, num_heads, eps, scale,
                     mxu_dtype):
    x = x_ref[...]                                   # (rows, E) rows of this tile
    _, E = x.shape
    S = seq_len
    Dh = E // num_heads

    # ---- LayerNorm over the embedding dim (biased variance, eps=1e-5), f32 ----
    mean = jnp.mean(x, axis=-1, keepdims=True)
    xc = x - mean
    var = jnp.mean(xc * xc, axis=-1, keepdims=True)
    xn = xc * jax.lax.rsqrt(var + eps)
    xn = xn * gamma_ref[...] + beta_ref[...]

    # ---- Fused QKV projection: one full-K matmul for the whole row tile ----
    qkv = jnp.dot(xn.astype(mxu_dtype), wqkv_ref[...].astype(mxu_dtype),
                  preferred_element_type=jnp.float32) + bqkv_ref[...]   # (rows, 3E)

    # contract last dims of q and k: q @ k^T without materializing kh.T
    qkT_dims = (((1,), (1,)), ((), ()))

    # Small static unroll (batches_per_block and num_heads are tiny here; at
    # realistic sizes the row tile bounds the unrolled live ranges).
    for b in range(batches_per_block):
        r0 = b * S
        for h in range(num_heads):
            c0 = h * Dh
            # 1/sqrt(Dh) applied in-kernel to q (VPU slack under the MXU).
            qh = qkv[r0:r0 + S, c0:c0 + Dh] * scale                  # (S, Dh)
            kh = qkv[r0:r0 + S, E + c0:E + c0 + Dh]                  # (S, Dh)
            vh = qkv[r0:r0 + S, 2 * E + c0:2 * E + c0 + Dh]          # (S, Dh)

            s = jax.lax.dot_general(qh.astype(mxu_dtype), kh.astype(mxu_dtype),
                                    qkT_dims,
                                    preferred_element_type=jnp.float32)  # (S, S)
            s = s - jnp.max(s, axis=-1, keepdims=True)
            p = jnp.exp(s)                                           # unnormalized
            denom = jnp.sum(p, axis=-1, keepdims=True)               # (S, 1)

            oh = jnp.dot(p.astype(mxu_dtype), vh.astype(mxu_dtype),
                         preferred_element_type=jnp.float32)          # (S, Dh)
            # Deferred softmax normalization: scale (S,Dh), not (S,S).
            oh = oh * pl.reciprocal(denom, approx=True)

            # Stage the head output at its column offset; the full-K output
            # projection below replaces H per-head K=Dh matmuls.
            head_out_ref[r0:r0 + S, c0:c0 + Dh] = oh

    proj = jnp.dot(head_out_ref[...].astype(mxu_dtype),
                   wo_ref[...].astype(mxu_dtype),
                   preferred_element_type=jnp.float32) + bo_ref[...]  # (rows, E)
    out_ref[...] = proj.astype(out_ref.dtype)


def msa_block(x, gamma, beta, wqkv, bqkv, wo, bo, *, num_heads,
              batches_per_block=None, mxu_dtype=None):
    """Fused LayerNorm + multi-head self-attention (dropout=0, batch_first).

    batches_per_block: batches processed per grid step (row tile = bpb * S).
      Default: collapse fully for tiny problems, otherwise ~512 rows/step.
    mxu_dtype: dtype for MXU operands. Default: bf16 when E >= 256, else f32.
    """
    B, S, E = x.shape
    assert E % num_heads == 0
    Dh = E // num_heads

    if mxu_dtype is None:
        mxu_dtype = jnp.bfloat16 if E >= 256 else jnp.float32

    if batches_per_block is None:
        target_rows = 512                      # bounded VMEM temporaries / tile
        bpb = min(B, max(1, target_rows // max(S, 1)))
        # Row tiles must divide B and respect the (8,*) sublane constraint
        # unless the block covers the whole array; otherwise collapse.
        if B % bpb != 0 or (bpb < B and (bpb * S) % 8 != 0):
            bpb = B
        batches_per_block = bpb
    assert B % batches_per_block == 0
    num_blocks = B // batches_per_block
    rows_per_block = batches_per_block * S

    # Fold (B, S) into one row axis (metadata-only reshape).
    x2 = x.reshape(B * S, E)

    kernel = functools.partial(
        msa_block_kernel,
        batches_per_block=batches_per_block, seq_len=S, num_heads=num_heads,
        eps=1e-5, scale=Dh ** -0.5, mxu_dtype=mxu_dtype)

    out2 = pl.pallas_call(
        kernel,
        out_shape=jax.ShapeDtypeStruct((B * S, E), x.dtype),
        grid_spec=pltpu.PrefetchScalarGridSpec(
            num_scalar_prefetch=0,
            grid=(num_blocks,),
            in_specs=[
                pl.BlockSpec((rows_per_block, E), lambda i: (i, 0)),  # x rows
                pl.BlockSpec((1, E), lambda i: (0, 0)),               # ln gamma
                pl.BlockSpec((1, E), lambda i: (0, 0)),               # ln beta
                pl.BlockSpec((E, 3 * E), lambda i: (0, 0)),           # W_qkv
                pl.BlockSpec((1, 3 * E), lambda i: (0, 0)),           # b_qkv
                pl.BlockSpec((E, E), lambda i: (0, 0)),               # W_out
                pl.BlockSpec((1, E), lambda i: (0, 0)),               # b_out
            ],
            out_specs=pl.BlockSpec((rows_per_block, E), lambda i: (i, 0)),
            scratch_shapes=[pltpu.VMEM((rows_per_block, E), jnp.float32)],
        ),
        compiler_params=pltpu.CompilerParams(
            dimension_semantics=("parallel",)),
    )(x2, gamma, beta, wqkv, bqkv, wo, bo)

    return out2.reshape(B, S, E)


def msa_block_ref(x, gamma, beta, wqkv, bqkv, wo, bo, *, num_heads):
    """Pure-JAX reference matching torch semantics (dropout=0, self-attn)."""
    B, S, E = x.shape
    Dh = E // num_heads
    mean = jnp.mean(x, axis=-1, keepdims=True)
    var = jnp.mean((x - mean) ** 2, axis=-1, keepdims=True)
    xn = (x - mean) / jnp.sqrt(var + 1e-5) * gamma[0] + beta[0]
    qkv = xn @ wqkv + bqkv[0]
    q, k, v = qkv[..., :E], qkv[..., E:2 * E], qkv[..., 2 * E:]
    q = q.reshape(B, S, num_heads, Dh).transpose(0, 2, 1, 3)
    k = k.reshape(B, S, num_heads, Dh).transpose(0, 2, 1, 3)
    v = v.reshape(B, S, num_heads, Dh).transpose(0, 2, 1, 3)
    s = jnp.einsum("bhqd,bhkd->bhqk", q, k) / (Dh ** 0.5)
    p = jax.nn.softmax(s, axis=-1)
    o = jnp.einsum("bhqk,bhkd->bhqd", p, v)
    o = o.transpose(0, 2, 1, 3).reshape(B, S, E)
    return o @ wo + bo[0]


if __name__ == "__main__":
    # Small shapes consistent with the module: batch=2, seq=8, embed_dim=32,
    # num_heads=4 (head_dim=8).
    B, S, E, H = 2, 8, 32, 4

    key = jax.random.PRNGKey(0)
    kx, kg, kb, kw1, kb1, kw2, kb2 = jax.random.split(key, 7)

    x = jax.random.normal(kx, (B, S, E), dtype=jnp.float32)

    # Deterministic synthetic parameters (shapes implied by the module).
    gamma = 1.0 + 0.05 * jax.random.normal(kg, (1, E), dtype=jnp.float32)
    beta = 0.05 * jax.random.normal(kb, (1, E), dtype=jnp.float32)
    wqkv = 0.05 * jax.random.normal(kw1, (E, 3 * E), dtype=jnp.float32)
    bqkv = 0.05 * jax.random.normal(kb1, (1, 3 * E), dtype=jnp.float32)
    wo = 0.05 * jax.random.normal(kw2, (E, E), dtype=jnp.float32)
    bo = 0.05 * jax.random.normal(kb2, (1, E), dtype=jnp.float32)

    out = msa_block(x, gamma, beta, wqkv, bqkv, wo, bo, num_heads=H)
    out = jax.block_until_ready(out)

    ref = msa_block_ref(x, gamma, beta, wqkv, bqkv, wo, bo, num_heads=H)
    assert out.shape == (B, S, E)
    # Tolerance accounts for the EUP approximate reciprocal in the deferred
    # softmax normalization (inference-grade; use approx=False for training
    # parity).
    assert float(jnp.max(jnp.abs(out - ref))) < 2e-3

    print("KERNEL_OK")
</pallas_src>

<mosaic_0001>
module attributes {stable_mosaic.version = 11 : i64} {
  func.func @msa_block_kernel(%arg0: i32, %arg1: memref<16x32xf32, #tpu.memory_space<vmem>>, %arg2: memref<1x32xf32, #tpu.memory_space<vmem>>, %arg3: memref<1x32xf32, #tpu.memory_space<vmem>>, %arg4: memref<32x96xf32, #tpu.memory_space<vmem>>, %arg5: memref<1x96xf32, #tpu.memory_space<vmem>>, %arg6: memref<32x32xf32, #tpu.memory_space<vmem>>, %arg7: memref<1x32xf32, #tpu.memory_space<vmem>>, %arg8: memref<16x32xf32, #tpu.memory_space<vmem>>, %arg9: memref<16x32xf32, #tpu.memory_space<vmem>>) attributes {dimension_semantics = [#tpu.dimension_semantics<parallel>], iteration_bounds = array<i64: 1>, scalar_prefetch = 0 : i64, scratch_operands = 1 : i64, tpu.core_type = #tpu.core_type<tc>, window_params = [{transform_indices = @transform_0, window_bounds = array<i64: 16, 32>}, {pipeline_mode = #tpu.pipeline_mode<synchronous>, transform_indices = @transform_1, window_bounds = array<i64: 1, 32>}, {pipeline_mode = #tpu.pipeline_mode<synchronous>, transform_indices = @transform_2, window_bounds = array<i64: 1, 32>}, {pipeline_mode = #tpu.pipeline_mode<synchronous>, transform_indices = @transform_3, window_bounds = array<i64: 32, 96>}, {pipeline_mode = #tpu.pipeline_mode<synchronous>, transform_indices = @transform_4, window_bounds = array<i64: 1, 96>}, {pipeline_mode = #tpu.pipeline_mode<synchronous>, transform_indices = @transform_5, window_bounds = array<i64: 32, 32>}, {pipeline_mode = #tpu.pipeline_mode<synchronous>, transform_indices = @transform_6, window_bounds = array<i64: 1, 32>}, {transform_indices = @transform_7, window_bounds = array<i64: 16, 32>}]} {
    %c0 = arith.constant 0 : index
    %c0_0 = arith.constant 0 : index
    %0 = vector.load %arg1[%c0, %c0_0] : memref<16x32xf32, #tpu.memory_space<vmem>>, vector<16x32xf32>
    %cst = arith.constant dense<0.000000e+00> : vector<16xf32>
    %1 = vector.multi_reduction <add>, %0, %cst [1] : vector<16x32xf32> to vector<16xf32>
    %2 = vector.shape_cast %1 : vector<16xf32> to vector<16x1xf32>
    %cst_1 = arith.constant 3.200000e+01 : f32
    %3 = vector.broadcast %cst_1 : f32 to vector<16x1xf32>
    %4 = arith.divf %2, %3 : vector<16x1xf32>
    %5 = vector.broadcast %4 : vector<16x1xf32> to vector<16x32xf32>
    %6 = arith.subf %0, %5 : vector<16x32xf32>
    %7 = arith.mulf %6, %6 : vector<16x32xf32>
    %cst_2 = arith.constant dense<0.000000e+00> : vector<16xf32>
    %8 = vector.multi_reduction <add>, %7, %cst_2 [1] : vector<16x32xf32> to vector<16xf32>
    %9 = vector.shape_cast %8 : vector<16xf32> to vector<16x1xf32>
    %cst_3 = arith.constant 3.200000e+01 : f32
    %10 = vector.broadcast %cst_3 : f32 to vector<16x1xf32>
    %11 = arith.divf %9, %10 : vector<16x1xf32>
    %cst_4 = arith.constant 9.99999974E-6 : f32
    %12 = vector.broadcast %cst_4 : f32 to vector<16x1xf32>
    %13 = arith.addf %11, %12 : vector<16x1xf32>
    %14 = math.rsqrt %13 : vector<16x1xf32>
    %15 = vector.broadcast %14 : vector<16x1xf32> to vector<16x32xf32>
    %16 = arith.mulf %6, %15 : vector<16x32xf32>
    %c0_5 = arith.constant 0 : index
    %c0_6 = arith.constant 0 : index
    %17 = vector.load %arg2[%c0_5, %c0_6] : memref<1x32xf32, #tpu.memory_space<vmem>>, vector<1x32xf32>
    %18 = vector.broadcast %17 : vector<1x32xf32> to vector<16x32xf32>
    %19 = arith.mulf %16, %18 : vector<16x32xf32>
    %c0_7 = arith.constant 0 : index
    %c0_8 = arith.constant 0 : index
    %20 = vector.load %arg3[%c0_7, %c0_8] : memref<1x32xf32, #tpu.memory_space<vmem>>, vector<1x32xf32>
    %21 = vector.broadcast %20 : vector<1x32xf32> to vector<16x32xf32>
    %22 = arith.addf %19, %21 : vector<16x32xf32>
    %c0_9 = arith.constant 0 : index
    %c0_10 = arith.constant 0 : index
    %23 = vector.load %arg4[%c0_9, %c0_10] : memref<32x96xf32, #tpu.memory_space<vmem>>, vector<32x96xf32>
    %cst_11 = arith.constant dense<0.000000e+00> : vector<16x96xf32>
    %24 = tpu.matmul %22, %23, %cst_11 {dimension_numbers = #tpu.dot_dimension_numbers<[1], [0], [0], [1], [0, 0, 1, 1], [], []>} : vector<16x32xf32>, vector<32x96xf32>, vector<16x96xf32> -> vector<16x96xf32>
    %c0_12 = arith.constant 0 : index
    %c0_13 = arith.constant 0 : index
    %25 = vector.load %arg5[%c0_12, %c0_13] : memref<1x96xf32, #tpu.memory_space<vmem>>, vector<1x96xf32>
    %26 = vector.broadcast %25 : vector<1x96xf32> to vector<16x96xf32>
    %27 = arith.addf %24, %26 : vector<16x96xf32>
    %28 = vector.extract_strided_slice %27 {offsets = [0, 0], sizes = [8, 8], strides = [1, 1]} : vector<16x96xf32> to vector<8x8xf32>
    %cst_14 = arith.constant 0.353553385 : f32
    %29 = vector.broadcast %cst_14 : f32 to vector<8x8xf32>
    %30 = arith.mulf %28, %29 : vector<8x8xf32>
    %31 = vector.extract_strided_slice %27 {offsets = [0, 32], sizes = [8, 8], strides = [1, 1]} : vector<16x96xf32> to vector<8x8xf32>
    %32 = vector.extract_strided_slice %27 {offsets = [0, 64], sizes = [8, 8], strides = [1, 1]} : vector<16x96xf32> to vector<8x8xf32>
    %cst_15 = arith.constant dense<0.000000e+00> : vector<8x8xf32>
    %33 = tpu.matmul %30, %31, %cst_15 {dimension_numbers = #tpu.dot_dimension_numbers<[1], [1], [0], [0], [0, 0, 1, 0], [], []>} : vector<8x8xf32>, vector<8x8xf32>, vector<8x8xf32> -> vector<8x8xf32>
    %cst_16 = arith.constant dense<0xFF800000> : vector<8xf32>
    %34 = vector.multi_reduction <maximumf>, %33, %cst_16 [1] : vector<8x8xf32> to vector<8xf32>
    %35 = vector.shape_cast %34 : vector<8xf32> to vector<8x1xf32>
    %36 = vector.broadcast %35 : vector<8x1xf32> to vector<8x8xf32>
    %37 = arith.subf %33, %36 : vector<8x8xf32>
    %38 = math.exp %37 : vector<8x8xf32>
    %cst_17 = arith.constant dense<0.000000e+00> : vector<8xf32>
    %39 = vector.multi_reduction <add>, %38, %cst_17 [1] : vector<8x8xf32> to vector<8xf32>
    %40 = vector.shape_cast %39 : vector<8xf32> to vector<8x1xf32>
    %cst_18 = arith.constant dense<0.000000e+00> : vector<8x8xf32>
    %41 = tpu.matmul %38, %32, %cst_18 {dimension_numbers = #tpu.dot_dimension_numbers<[1], [0], [0], [1], [0, 0, 1, 1], [], []>} : vector<8x8xf32>, vector<8x8xf32>, vector<8x8xf32> -> vector<8x8xf32>
    %42 = tpu.reciprocal %40 {approx = true} : vector<8x1xf32> -> vector<8x1xf32>
    %43 = vector.broadcast %42 : vector<8x1xf32> to vector<8x8xf32>
    %44 = arith.mulf %41, %43 : vector<8x8xf32>
    %c0_19 = arith.constant 0 : index
    %c0_20 = arith.constant 0 : index
    %45 = vector.load %arg9[%c0_19, %c0_20] : memref<16x32xf32, #tpu.memory_space<vmem>>, vector<8x8xf32>
    tpu.vector_store %arg9[%c0_19, %c0_20], %44 {strides = array<i32>} : memref<16x32xf32, #tpu.memory_space<vmem>>, vector<8x8xf32>,
    %46 = vector.extract_strided_slice %27 {offsets = [0, 8], sizes = [8, 8], strides = [1, 1]} : vector<16x96xf32> to vector<8x8xf32>
    %cst_21 = arith.constant 0.353553385 : f32
    %47 = vector.broadcast %cst_21 : f32 to vector<8x8xf32>
    %48 = arith.mulf %46, %47 : vector<8x8xf32>
    %49 = vector.extract_strided_slice %27 {offsets = [0, 40], sizes = [8, 8], strides = [1, 1]} : vector<16x96xf32> to vector<8x8xf32>
    %50 = vector.extract_strided_slice %27 {offsets = [0, 72], sizes = [8, 8], strides = [1, 1]} : vector<16x96xf32> to vector<8x8xf32>
    %cst_22 = arith.constant dense<0.000000e+00> : vector<8x8xf32>
    %51 = tpu.matmul %48, %49, %cst_22 {dimension_numbers = #tpu.dot_dimension_numbers<[1], [1], [0], [0], [0, 0, 1, 0], [], []>} : vector<8x8xf32>, vector<8x8xf32>, vector<8x8xf32> -> vector<8x8xf32>
    %cst_23 = arith.constant dense<0xFF800000> : vector<8xf32>
    %52 = vector.multi_reduction <maximumf>, %51, %cst_23 [1] : vector<8x8xf32> to vector<8xf32>
    %53 = vector.shape_cast %52 : vector<8xf32> to vector<8x1xf32>
    %54 = vector.broadcast %53 : vector<8x1xf32> to vector<8x8xf32>
    %55 = arith.subf %51, %54 : vector<8x8xf32>
    %56 = math.exp %55 : vector<8x8xf32>
    %cst_24 = arith.constant dense<0.000000e+00> : vector<8xf32>
    %57 = vector.multi_reduction <add>, %56, %cst_24 [1] : vector<8x8xf32> to vector<8xf32>
    %58 = vector.shape_cast %57 : vector<8xf32> to vector<8x1xf32>
    %cst_25 = arith.constant dense<0.000000e+00> : vector<8x8xf32>
    %59 = tpu.matmul %56, %50, %cst_25 {dimension_numbers = #tpu.dot_dimension_numbers<[1], [0], [0], [1], [0, 0, 1, 1], [], []>} : vector<8x8xf32>, vector<8x8xf32>, vector<8x8xf32> -> vector<8x8xf32>
    %60 = tpu.reciprocal %58 {approx = true} : vector<8x1xf32> -> vector<8x1xf32>
    %61 = vector.broadcast %60 : vector<8x1xf32> to vector<8x8xf32>
    %62 = arith.mulf %59, %61 : vector<8x8xf32>
    %c0_26 = arith.constant 0 : index
    %c8 = arith.constant 8 : index
    %63 = vector.load %arg9[%c0_26, %c8] : memref<16x32xf32, #tpu.memory_space<vmem>>, vector<8x8xf32>
    tpu.vector_store %arg9[%c0_26, %c8], %62 {strides = array<i32>} : memref<16x32xf32, #tpu.memory_space<vmem>>, vector<8x8xf32>,
    %64 = vector.extract_strided_slice %27 {offsets = [0, 16], sizes = [8, 8], strides = [1, 1]} : vector<16x96xf32> to vector<8x8xf32>
    %cst_27 = arith.constant 0.353553385 : f32
    %65 = vector.broadcast %cst_27 : f32 to vector<8x8xf32>
    %66 = arith.mulf %64, %65 : vector<8x8xf32>
    %67 = vector.extract_strided_slice %27 {offsets = [0, 48], sizes = [8, 8], strides = [1, 1]} : vector<16x96xf32> to vector<8x8xf32>
    %68 = vector.extract_strided_slice %27 {offsets = [0, 80], sizes = [8, 8], strides = [1, 1]} : vector<16x96xf32> to vector<8x8xf32>
    %cst_28 = arith.constant dense<0.000000e+00> : vector<8x8xf32>
    %69 = tpu.matmul %66, %67, %cst_28 {dimension_numbers = #tpu.dot_dimension_numbers<[1], [1], [0], [0], [0, 0, 1, 0], [], []>} : vector<8x8xf32>, vector<8x8xf32>, vector<8x8xf32> -> vector<8x8xf32>
    %cst_29 = arith.constant dense<0xFF800000> : vector<8xf32>
    %70 = vector.multi_reduction <maximumf>, %69, %cst_29 [1] : vector<8x8xf32> to vector<8xf32>
    %71 = vector.shape_cast %70 : vector<8xf32> to vector<8x1xf32>
    %72 = vector.broadcast %71 : vector<8x1xf32> to vector<8x8xf32>
    %73 = arith.subf %69, %72 : vector<8x8xf32>
    %74 = math.exp %73 : vector<8x8xf32>
    %cst_30 = arith.constant dense<0.000000e+00> : vector<8xf32>
    %75 = vector.multi_reduction <add>, %74, %cst_30 [1] : vector<8x8xf32> to vector<8xf32>
    %76 = vector.shape_cast %75 : vector<8xf32> to vector<8x1xf32>
    %cst_31 = arith.constant dense<0.000000e+00> : vector<8x8xf32>
    %77 = tpu.matmul %74, %68, %cst_31 {dimension_numbers = #tpu.dot_dimension_numbers<[1], [0], [0], [1], [0, 0, 1, 1], [], []>} : vector<8x8xf32>, vector<8x8xf32>, vector<8x8xf32> -> vector<8x8xf32>
    %78 = tpu.reciprocal %76 {approx = true} : vector<8x1xf32> -> vector<8x1xf32>
    %79 = vector.broadcast %78 : vector<8x1xf32> to vector<8x8xf32>
    %80 = arith.mulf %77, %79 : vector<8x8xf32>
    %c0_32 = arith.constant 0 : index
    %c16 = arith.constant 16 : index
    %81 = vector.load %arg9[%c0_32, %c16] : memref<16x32xf32, #tpu.memory_space<vmem>>, vector<8x8xf32>
    tpu.vector_store %arg9[%c0_32, %c16], %80 {strides = array<i32>} : memref<16x32xf32, #tpu.memory_space<vmem>>, vector<8x8xf32>,
    %82 = vector.extract_strided_slice %27 {offsets = [0, 24], sizes = [8, 8], strides = [1, 1]} : vector<16x96xf32> to vector<8x8xf32>
    %cst_33 = arith.constant 0.353553385 : f32
    %83 = vector.broadcast %cst_33 : f32 to vector<8x8xf32>
    %84 = arith.mulf %82, %83 : vector<8x8xf32>
    %85 = vector.extract_strided_slice %27 {offsets = [0, 56], sizes = [8, 8], strides = [1, 1]} : vector<16x96xf32> to vector<8x8xf32>
    %86 = vector.extract_strided_slice %27 {offsets = [0, 88], sizes = [8, 8], strides = [1, 1]} : vector<16x96xf32> to vector<8x8xf32>
    %cst_34 = arith.constant dense<0.000000e+00> : vector<8x8xf32>
    %87 = tpu.matmul %84, %85, %cst_34 {dimension_numbers = #tpu.dot_dimension_numbers<[1], [1], [0], [0], [0, 0, 1, 0], [], []>} : vector<8x8xf32>, vector<8x8xf32>, vector<8x8xf32> -> vector<8x8xf32>
    %cst_35 = arith.constant dense<0xFF800000> : vector<8xf32>
    %88 = vector.multi_reduction <maximumf>, %87, %cst_35 [1] : vector<8x8xf32> to vector<8xf32>
    %89 = vector.shape_cast %88 : vector<8xf32> to vector<8x1xf32>
    %90 = vector.broadcast %89 : vector<8x1xf32> to vector<8x8xf32>
    %91 = arith.subf %87, %90 : vector<8x8xf32>
    %92 = math.exp %91 : vector<8x8xf32>
    %cst_36 = arith.constant dense<0.000000e+00> : vector<8xf32>
    %93 = vector.multi_reduction <add>, %92, %cst_36 [1] : vector<8x8xf32> to vector<8xf32>
    %94 = vector.shape_cast %93 : vector<8xf32> to vector<8x1xf32>
    %cst_37 = arith.constant dense<0.000000e+00> : vector<8x8xf32>
    %95 = tpu.matmul %92, %86, %cst_37 {dimension_numbers = #tpu.dot_dimension_numbers<[1], [0], [0], [1], [0, 0, 1, 1], [], []>} : vector<8x8xf32>, vector<8x8xf32>, vector<8x8xf32> -> vector<8x8xf32>
    %96 = tpu.reciprocal %94 {approx = true} : vector<8x1xf32> -> vector<8x1xf32>
    %97 = vector.broadcast %96 : vector<8x1xf32> to vector<8x8xf32>
    %98 = arith.mulf %95, %97 : vector<8x8xf32>
    %c0_38 = arith.constant 0 : index
    %c24 = arith.constant 24 : index
    %99 = vector.load %arg9[%c0_38, %c24] : memref<16x32xf32, #tpu.memory_space<vmem>>, vector<8x8xf32>
    tpu.vector_store %arg9[%c0_38, %c24], %98 {strides = array<i32>} : memref<16x32xf32, #tpu.memory_space<vmem>>, vector<8x8xf32>,
    %100 = vector.extract_strided_slice %27 {offsets = [8, 0], sizes = [8, 8], strides = [1, 1]} : vector<16x96xf32> to vector<8x8xf32>
    %cst_39 = arith.constant 0.353553385 : f32
    %101 = vector.broadcast %cst_39 : f32 to vector<8x8xf32>
    %102 = arith.mulf %100, %101 : vector<8x8xf32>
    %103 = vector.extract_strided_slice %27 {offsets = [8, 32], sizes = [8, 8], strides = [1, 1]} : vector<16x96xf32> to vector<8x8xf32>
    %104 = vector.extract_strided_slice %27 {offsets = [8, 64], sizes = [8, 8], strides = [1, 1]} : vector<16x96xf32> to vector<8x8xf32>
    %cst_40 = arith.constant dense<0.000000e+00> : vector<8x8xf32>
    %105 = tpu.matmul %102, %103, %cst_40 {dimension_numbers = #tpu.dot_dimension_numbers<[1], [1], [0], [0], [0, 0, 1, 0], [], []>} : vector<8x8xf32>, vector<8x8xf32>, vector<8x8xf32> -> vector<8x8xf32>
    %cst_41 = arith.constant dense<0xFF800000> : vector<8xf32>
    %106 = vector.multi_reduction <maximumf>, %105, %cst_41 [1] : vector<8x8xf32> to vector<8xf32>
    %107 = vector.shape_cast %106 : vector<8xf32> to vector<8x1xf32>
    %108 = vector.broadcast %107 : vector<8x1xf32> to vector<8x8xf32>
    %109 = arith.subf %105, %108 : vector<8x8xf32>
    %110 = math.exp %109 : vector<8x8xf32>
    %cst_42 = arith.constant dense<0.000000e+00> : vector<8xf32>
    %111 = vector.multi_reduction <add>, %110, %cst_42 [1] : vector<8x8xf32> to vector<8xf32>
    %112 = vector.shape_cast %111 : vector<8xf32> to vector<8x1xf32>
    %cst_43 = arith.constant dense<0.000000e+00> : vector<8x8xf32>
    %113 = tpu.matmul %110, %104, %cst_43 {dimension_numbers = #tpu.dot_dimension_numbers<[1], [0], [0], [1], [0, 0, 1, 1], [], []>} : vector<8x8xf32>, vector<8x8xf32>, vector<8x8xf32> -> vector<8x8xf32>
    %114 = tpu.reciprocal %112 {approx = true} : vector<8x1xf32> -> vector<8x1xf32>
    %115 = vector.broadcast %114 : vector<8x1xf32> to vector<8x8xf32>
    %116 = arith.mulf %113, %115 : vector<8x8xf32>
    %c8_44 = arith.constant 8 : index
    %c0_45 = arith.constant 0 : index
    %117 = vector.load %arg9[%c8_44, %c0_45] : memref<16x32xf32, #tpu.memory_space<vmem>>, vector<8x8xf32>
    tpu.vector_store %arg9[%c8_44, %c0_45], %116 {strides = array<i32>} : memref<16x32xf32, #tpu.memory_space<vmem>>, vector<8x8xf32>,
    %118 = vector.extract_strided_slice %27 {offsets = [8, 8], sizes = [8, 8], strides = [1, 1]} : vector<16x96xf32> to vector<8x8xf32>
    %cst_46 = arith.constant 0.353553385 : f32
    %119 = vector.broadcast %cst_46 : f32 to vector<8x8xf32>
    %120 = arith.mulf %118, %119 : vector<8x8xf32>
    %121 = vector.extract_strided_slice %27 {offsets = [8, 40], sizes = [8, 8], strides = [1, 1]} : vector<16x96xf32> to vector<8x8xf32>
    %122 = vector.extract_strided_slice %27 {offsets = [8, 72], sizes = [8, 8], strides = [1, 1]} : vector<16x96xf32> to vector<8x8xf32>
    %cst_47 = arith.constant dense<0.000000e+00> : vector<8x8xf32>
    %123 = tpu.matmul %120, %121, %cst_47 {dimension_numbers = #tpu.dot_dimension_numbers<[1], [1], [0], [0], [0, 0, 1, 0], [], []>} : vector<8x8xf32>, vector<8x8xf32>, vector<8x8xf32> -> vector<8x8xf32>
    %cst_48 = arith.constant dense<0xFF800000> : vector<8xf32>
    %124 = vector.multi_reduction <maximumf>, %123, %cst_48 [1] : vector<8x8xf32> to vector<8xf32>
    %125 = vector.shape_cast %124 : vector<8xf32> to vector<8x1xf32>
    %126 = vector.broadcast %125 : vector<8x1xf32> to vector<8x8xf32>
    %127 = arith.subf %123, %126 : vector<8x8xf32>
    %128 = math.exp %127 : vector<8x8xf32>
    %cst_49 = arith.constant dense<0.000000e+00> : vector<8xf32>
    %129 = vector.multi_reduction <add>, %128, %cst_49 [1] : vector<8x8xf32> to vector<8xf32>
    %130 = vector.shape_cast %129 : vector<8xf32> to vector<8x1xf32>
    %cst_50 = arith.constant dense<0.000000e+00> : vector<8x8xf32>
    %131 = tpu.matmul %128, %122, %cst_50 {dimension_numbers = #tpu.dot_dimension_numbers<[1], [0], [0], [1], [0, 0, 1, 1], [], []>} : vector<8x8xf32>, vector<8x8xf32>, vector<8x8xf32> -> vector<8x8xf32>
    %132 = tpu.reciprocal %130 {approx = true} : vector<8x1xf32> -> vector<8x1xf32>
    %133 = vector.broadcast %132 : vector<8x1xf32> to vector<8x8xf32>
    %134 = arith.mulf %131, %133 : vector<8x8xf32>
    %c8_51 = arith.constant 8 : index
    %c8_52 = arith.constant 8 : index
    %135 = vector.load %arg9[%c8_51, %c8_52] : memref<16x32xf32, #tpu.memory_space<vmem>>, vector<8x8xf32>
    tpu.vector_store %arg9[%c8_51, %c8_52], %134 {strides = array<i32>} : memref<16x32xf32, #tpu.memory_space<vmem>>, vector<8x8xf32>,
    %136 = vector.extract_strided_slice %27 {offsets = [8, 16], sizes = [8, 8], strides = [1, 1]} : vector<16x96xf32> to vector<8x8xf32>
    %cst_53 = arith.constant 0.353553385 : f32
    %137 = vector.broadcast %cst_53 : f32 to vector<8x8xf32>
    %138 = arith.mulf %136, %137 : vector<8x8xf32>
    %139 = vector.extract_strided_slice %27 {offsets = [8, 48], sizes = [8, 8], strides = [1, 1]} : vector<16x96xf32> to vector<8x8xf32>
    %140 = vector.extract_strided_slice %27 {offsets = [8, 80], sizes = [8, 8], strides = [1, 1]} : vector<16x96xf32> to vector<8x8xf32>
    %cst_54 = arith.constant dense<0.000000e+00> : vector<8x8xf32>
    %141 = tpu.matmul %138, %139, %cst_54 {dimension_numbers = #tpu.dot_dimension_numbers<[1], [1], [0], [0], [0, 0, 1, 0], [], []>} : vector<8x8xf32>, vector<8x8xf32>, vector<8x8xf32> -> vector<8x8xf32>
    %cst_55 = arith.constant dense<0xFF800000> : vector<8xf32>
    %142 = vector.multi_reduction <maximumf>, %141, %cst_55 [1] : vector<8x8xf32> to vector<8xf32>
    %143 = vector.shape_cast %142 : vector<8xf32> to vector<8x1xf32>
    %144 = vector.broadcast %143 : vector<8x1xf32> to vector<8x8xf32>
    %145 = arith.subf %141, %144 : vector<8x8xf32>
    %146 = math.exp %145 : vector<8x8xf32>
    %cst_56 = arith.constant dense<0.000000e+00> : vector<8xf32>
    %147 = vector.multi_reduction <add>, %146, %cst_56 [1] : vector<8x8xf32> to vector<8xf32>
    %148 = vector.shape_cast %147 : vector<8xf32> to vector<8x1xf32>
    %cst_57 = arith.constant dense<0.000000e+00> : vector<8x8xf32>
    %149 = tpu.matmul %146, %140, %cst_57 {dimension_numbers = #tpu.dot_dimension_numbers<[1], [0], [0], [1], [0, 0, 1, 1], [], []>} : vector<8x8xf32>, vector<8x8xf32>, vector<8x8xf32> -> vector<8x8xf32>
    %150 = tpu.reciprocal %148 {approx = true} : vector<8x1xf32> -> vector<8x1xf32>
    %151 = vector.broadcast %150 : vector<8x1xf32> to vector<8x8xf32>
    %152 = arith.mulf %149, %151 : vector<8x8xf32>
    %c8_58 = arith.constant 8 : index
    %c16_59 = arith.constant 16 : index
    %153 = vector.load %arg9[%c8_58, %c16_59] : memref<16x32xf32, #tpu.memory_space<vmem>>, vector<8x8xf32>
    tpu.vector_store %arg9[%c8_58, %c16_59], %152 {strides = array<i32>} : memref<16x32xf32, #tpu.memory_space<vmem>>, vector<8x8xf32>,
    %154 = vector.extract_strided_slice %27 {offsets = [8, 24], sizes = [8, 8], strides = [1, 1]} : vector<16x96xf32> to vector<8x8xf32>
    %cst_60 = arith.constant 0.353553385 : f32
    %155 = vector.broadcast %cst_60 : f32 to vector<8x8xf32>
    %156 = arith.mulf %154, %155 : vector<8x8xf32>
    %157 = vector.extract_strided_slice %27 {offsets = [8, 56], sizes = [8, 8], strides = [1, 1]} : vector<16x96xf32> to vector<8x8xf32>
    %158 = vector.extract_strided_slice %27 {offsets = [8, 88], sizes = [8, 8], strides = [1, 1]} : vector<16x96xf32> to vector<8x8xf32>
    %cst_61 = arith.constant dense<0.000000e+00> : vector<8x8xf32>
    %159 = tpu.matmul %156, %157, %cst_61 {dimension_numbers = #tpu.dot_dimension_numbers<[1], [1], [0], [0], [0, 0, 1, 0], [], []>} : vector<8x8xf32>, vector<8x8xf32>, vector<8x8xf32> -> vector<8x8xf32>
    %cst_62 = arith.constant dense<0xFF800000> : vector<8xf32>
    %160 = vector.multi_reduction <maximumf>, %159, %cst_62 [1] : vector<8x8xf32> to vector<8xf32>
    %161 = vector.shape_cast %160 : vector<8xf32> to vector<8x1xf32>
    %162 = vector.broadcast %161 : vector<8x1xf32> to vector<8x8xf32>
    %163 = arith.subf %159, %162 : vector<8x8xf32>
    %164 = math.exp %163 : vector<8x8xf32>
    %cst_63 = arith.constant dense<0.000000e+00> : vector<8xf32>
    %165 = vector.multi_reduction <add>, %164, %cst_63 [1] : vector<8x8xf32> to vector<8xf32>
    %166 = vector.shape_cast %165 : vector<8xf32> to vector<8x1xf32>
    %cst_64 = arith.constant dense<0.000000e+00> : vector<8x8xf32>
    %167 = tpu.matmul %164, %158, %cst_64 {dimension_numbers = #tpu.dot_dimension_numbers<[1], [0], [0], [1], [0, 0, 1, 1], [], []>} : vector<8x8xf32>, vector<8x8xf32>, vector<8x8xf32> -> vector<8x8xf32>
    %168 = tpu.reciprocal %166 {approx = true} : vector<8x1xf32> -> vector<8x1xf32>
    %169 = vector.broadcast %168 : vector<8x1xf32> to vector<8x8xf32>
    %170 = arith.mulf %167, %169 : vector<8x8xf32>
    %c8_65 = arith.constant 8 : index
    %c24_66 = arith.constant 24 : index
    %171 = vector.load %arg9[%c8_65, %c24_66] : memref<16x32xf32, #tpu.memory_space<vmem>>, vector<8x8xf32>
    tpu.vector_store %arg9[%c8_65, %c24_66], %170 {strides = array<i32>} : memref<16x32xf32, #tpu.memory_space<vmem>>, vector<8x8xf32>,
    %c0_67 = arith.constant 0 : index
    %c0_68 = arith.constant 0 : index
    %172 = vector.load %arg9[%c0_67, %c0_68] : memref<16x32xf32, #tpu.memory_space<vmem>>, vector<16x32xf32>
    %c0_69 = arith.constant 0 : index
    %c0_70 = arith.constant 0 : index
    %173 = vector.load %arg6[%c0_69, %c0_70] : memref<32x32xf32, #tpu.memory_space<vmem>>, vector<32x32xf32>
    %cst_71 = arith.constant dense<0.000000e+00> : vector<16x32xf32>
    %174 = tpu.matmul %172, %173, %cst_71 {dimension_numbers = #tpu.dot_dimension_numbers<[1], [0], [0], [1], [0, 0, 1, 1], [], []>} : vector<16x32xf32>, vector<32x32xf32>, vector<16x32xf32> -> vector<16x32xf32>
    %c0_72 = arith.constant 0 : index
    %c0_73 = arith.constant 0 : index
    %175 = vector.load %arg7[%c0_72, %c0_73] : memref<1x32xf32, #tpu.memory_space<vmem>>, vector<1x32xf32>
    %176 = vector.broadcast %175 : vector<1x32xf32> to vector<16x32xf32>
    %177 = arith.addf %174, %176 : vector<16x32xf32>
    %c0_74 = arith.constant 0 : index
    %c0_75 = arith.constant 0 : index
    %178 = vector.load %arg8[%c0_74, %c0_75] : memref<16x32xf32, #tpu.memory_space<vmem>>, vector<16x32xf32>
    tpu.vector_store %arg8[%c0_74, %c0_75], %177 {strides = array<i32>} : memref<16x32xf32, #tpu.memory_space<vmem>>, vector<16x32xf32>,
    return
  }
  func.func @transform_0(%arg0: i32) -> (i32, i32) {
    %c0_i32 = arith.constant 0 : i32
    %c0_i32_0 = arith.constant 0 : i32
    return %arg0, %c0_i32 : i32, i32
  }
  func.func @transform_1(%arg0: i32) -> (i32, i32) {
    %c0_i32 = arith.constant 0 : i32
    %c0_i32_0 = arith.constant 0 : i32
    %c0_i32_1 = arith.constant 0 : i32
    return %c0_i32, %c0_i32_0 : i32, i32
  }
  func.func @transform_2(%arg0: i32) -> (i32, i32) {
    %c0_i32 = arith.constant 0 : i32
    %c0_i32_0 = arith.constant 0 : i32
    %c0_i32_1 = arith.constant 0 : i32
    return %c0_i32, %c0_i32_0 : i32, i32
  }
  func.func @transform_3(%arg0: i32) -> (i32, i32) {
    %c0_i32 = arith.constant 0 : i32
    %c0_i32_0 = arith.constant 0 : i32
    %c0_i32_1 = arith.constant 0 : i32
    return %c0_i32, %c0_i32_0 : i32, i32
  }
  func.func @transform_4(%arg0: i32) -> (i32, i32) {
    %c0_i32 = arith.constant 0 : i32
    %c0_i32_0 = arith.constant 0 : i32
    %c0_i32_1 = arith.constant 0 : i32
    return %c0_i32, %c0_i32_0 : i32, i32
  }
  func.func @transform_5(%arg0: i32) -> (i32, i32) {
    %c0_i32 = arith.constant 0 : i32
    %c0_i32_0 = arith.constant 0 : i32
    %c0_i32_1 = arith.constant 0 : i32
    return %c0_i32, %c0_i32_0 : i32, i32
  }
  func.func @transform_6(%arg0: i32) -> (i32, i32) {
    %c0_i32 = arith.constant 0 : i32
    %c0_i32_0 = arith.constant 0 : i32
    %c0_i32_1 = arith.constant 0 : i32
    return %c0_i32, %c0_i32_0 : i32, i32
  }
  func.func @transform_7(%arg0: i32) -> (i32, i32) {
    %c0_i32 = arith.constant 0 : i32
    %c0_i32_0 = arith.constant 0 : i32
    return %arg0, %c0_i32 : i32, i32
  }
}

</mosaic_0001>

<llo_original>
// kernel: tpu_custom_call.1
$region0: #{tpu_custom_call.1}
  #allocation0 [shape = 'u32[]', space=smem, size = 0x4, offset = 0x4, fixed_abs, tag = 'smem constant byte address 0x4 - core index']
  #allocation1 [shape = 'u32[144,128]{1,0:T(1,128)}', space=vmem, size = 0x12000, scoped, tag = 'internal scratch']
  #allocation2 [shape = 'f32[16,32]{1,0:T(8,128)}', space=vmem, size = 0x2000, scoped, tag = 'scratch operand']
  %s0 = inlined_call_operand.hbm [shape: f32[16,32], index: 0, kind: input, shape index: {}]
  %s1 = inlined_call_operand.vmem [shape: f32[1,32], index: 1, kind: input, shape index: {}]
  %s2 = inlined_call_operand.vmem [shape: f32[1,32], index: 2, kind: input, shape index: {}]
  %s3 = inlined_call_operand.hbm [shape: f32[32,96], index: 3, kind: input, shape index: {}]
  %s4 = inlined_call_operand.vmem [shape: f32[1,96], index: 4, kind: input, shape index: {}]
  %s5 = inlined_call_operand.hbm [shape: f32[32,32], index: 5, kind: input, shape index: {}]
  %s6 = inlined_call_operand.vmem [shape: f32[1,32], index: 6, kind: input, shape index: {}]
  %s7 = inlined_call_operand.hbm [shape: f32[16,32], index: 7, kind: output, shape index: {}]
  %s8 = sld [smem:[#allocation0]]
  $region50: #{tpu_custom_call.1} parent=0
    _
  %s10 = ssub.s32 1, %s8
  %s11 = scalar_select 0, %s10, %s8
  $region1: #{tpu_custom_call.1} parent=0
    #allocation3 [shape = 'u8[8192]{0}', space=vmem, size = 0x2000, scoped, tag = 'input window, operand 0, single buffered']
    #allocation4 [shape = 's32[1]{0}', space=sflag, size = 0x4, scoped, tag = 'scoped memory for tpu_custom_call.1']
    #allocation5 [shape = 's32[1]{0}', space=sflag, size = 0x4, scoped, tag = 'scoped memory for tpu_custom_call.1']
    #allocation6 [shape = 'u8[16384]{0}', space=vmem, size = 0x4000, scoped, tag = 'input window, operand 3, single buffered']
    #allocation7 [shape = 's32[1]{0}', space=sflag, size = 0x4, scoped, tag = 'scoped memory for tpu_custom_call.1']
    #allocation8 [shape = 'u8[16384]{0}', space=vmem, size = 0x4000, scoped, tag = 'input window, operand 5, single buffered']
    #allocation9 [shape = 'u8[8192]{0}', space=vmem, size = 0x2000, scoped, tag = 'output window, operand 0, single buffered']
    %12 = vsyncpa [#allocation4], 0
    %13 = vsyncpa [#allocation7], 0
    %14 = vsyncpa [#allocation5], 0
    // Predicated region
    $region2: #{tpu_custom_call.1} parent=1 // pred_check
      _
    $region3: #{tpu_custom_call.1} parent=1 // pred_check_branch
      %16 = sbr.rel (0) target = $region5
    $region4: #{tpu_custom_call.1} parent=1 // pred_region
      %s18 = ssub.s32 256, 256
      %19 = vsyncadd [#allocation4], %s18
      %s20 = sshll.u32 [#allocation3], 4
      %s21 = int_to_ptr.vmem [resolvable:$true] %s20
      %26 = dma.hbm_to_vmem [thread:$0]  %s0, 256, %s21, [#allocation4], 128, 128, 8
    $region5: #{tpu_custom_call.1} parent=1 // pred_fallthru
      _
    // Predicated region
    $region6: #{tpu_custom_call.1} parent=1 // pred_check
      _
    $region7: #{tpu_custom_call.1} parent=1 // pred_check_branch
      %28 = sbr.rel (0) target = $region9
    $region8: #{tpu_custom_call.1} parent=1 // pred_region
      _
    $region9: #{tpu_custom_call.1} parent=1 // pred_fallthru
      _
    // Predicated region
    $region10: #{tpu_custom_call.1} parent=1 // pred_check
      _
    $region11: #{tpu_custom_call.1} parent=1 // pred_check_branch
      %30 = sbr.rel (0) target = $region13
    $region12: #{tpu_custom_call.1} parent=1 // pred_region
      _
    $region13: #{tpu_custom_call.1} parent=1 // pred_fallthru
      _
    // Predicated region
    $region14: #{tpu_custom_call.1} parent=1 // pred_check
      _
    $region15: #{tpu_custom_call.1} parent=1 // pred_check_branch
      %32 = sbr.rel (0) target = $region17
    $region16: #{tpu_custom_call.1} parent=1 // pred_region
      %s34 = ssub.s32 512, 512
      %35 = vsyncadd [#allocation7], %s34
      %s36 = sshll.u32 [#allocation6], 4
      %s37 = int_to_ptr.vmem [resolvable:$true] %s36
      %42 = dma.hbm_to_vmem [thread:$0]  %s3, 512, %s37, [#allocation7], 128, 128, 8
    $region17: #{tpu_custom_call.1} parent=1 // pred_fallthru
      _
    // Predicated region
    $region18: #{tpu_custom_call.1} parent=1 // pred_check
      _
    $region19: #{tpu_custom_call.1} parent=1 // pred_check_branch
      %44 = sbr.rel (0) target = $region21
    $region20: #{tpu_custom_call.1} parent=1 // pred_region
      _
    $region21: #{tpu_custom_call.1} parent=1 // pred_fallthru
      _
    // Predicated region
    $region22: #{tpu_custom_call.1} parent=1 // pred_check
      _
    $region23: #{tpu_custom_call.1} parent=1 // pred_check_branch
      %46 = sbr.rel (0) target = $region25
    $region24: #{tpu_custom_call.1} parent=1 // pred_region
      %s48 = ssub.s32 512, 512
      %49 = vsyncadd [#allocation7], %s48
      %s50 = sshll.u32 [#allocation8], 4
      %s51 = int_to_ptr.vmem [resolvable:$true] %s50
      %56 = dma.hbm_to_vmem [thread:$0]  %s5, 512, %s51, [#allocation7], 128, 128, 8
    $region25: #{tpu_custom_call.1} parent=1 // pred_fallthru
      _
    // Predicated region
    $region26: #{tpu_custom_call.1} parent=1 // pred_check
      _
    $region27: #{tpu_custom_call.1} parent=1 // pred_check_branch
      %58 = sbr.rel (0) target = $region29
    $region28: #{tpu_custom_call.1} parent=1 // pred_region
      _
    $region29: #{tpu_custom_call.1} parent=1 // pred_fallthru
      _
    // Predicated region
    $region30: #{tpu_custom_call.1} parent=1 // pred_check
      _
    $region31: #{tpu_custom_call.1} parent=1 // pred_check_branch
      %60 = sbr.rel (0) target = $region33
    $region32: #{tpu_custom_call.1} parent=1 // pred_region
      %61 = dma.done [#allocation4], 256
    $region33: #{tpu_custom_call.1} parent=1 // pred_fallthru
      _
    // Predicated region
    $region34: #{tpu_custom_call.1} parent=1 // pred_check
      _
    $region35: #{tpu_custom_call.1} parent=1 // pred_check_branch
      %63 = sbr.rel (0) target = $region37
    $region36: #{tpu_custom_call.1} parent=1 // pred_region
      %64 = dma.done [#allocation7], 512
    $region37: #{tpu_custom_call.1} parent=1 // pred_fallthru
      _
    // Predicated region
    $region38: #{tpu_custom_call.1} parent=1 // pred_check
      _
    $region39: #{tpu_custom_call.1} parent=1 // pred_check_branch
      %66 = sbr.rel (0) target = $region41
    $region40: #{tpu_custom_call.1} parent=1 // pred_region
      %67 = dma.done [#allocation7], 512
    $region41: #{tpu_custom_call.1} parent=1 // pred_fallthru
      _
    %v68 = vld [vmem:[#allocation3] sm:$0xff]
    %v69 = vld [vmem:[#allocation3 + $0x8] sm:$0xff]
    %vm70 = vcmask 261120
    %v71 = vsel %vm70, %v68, 0.0
    %72 = vadd.xlane.f32.xlu0 %v71
    %v73 = vpop.xlane.xlu0 %72
    %v74 = vsel %vm70, %v69, 0.0
    %75 = vadd.xlane.f32.xlu0 %v74
    %v76 = vpop.xlane.xlu0 %75
    %v77 = vrcp.pop 32.0
    %v78 = vmul.f32 %v73, %v77
    %v79 = vmul.f32 %v76, %v77
    %v80 = vsub.f32 %v68, %v78
    %v81 = vsub.f32 %v69, %v79
    %v82 = vmul.f32 %v80, %v80
    %v83 = vmul.f32 %v81, %v81
    %v84 = vsel %vm70, %v82, 0.0
    %85 = vadd.xlane.f32.xlu0 %v84
    %v86 = vpop.xlane.xlu0 %85
    %v87 = vsel %vm70, %v83, 0.0
    %88 = vadd.xlane.f32.xlu0 %v87
    %v89 = vpop.xlane.xlu0 %88
    %v90 = vmul.f32 %v86, %v77
    %v91 = vmul.f32 %v89, %v77
    %v92 = vadd.f32 %v90, 1e-05
    %v93 = vadd.f32 %v91, 1e-05
    %v94 = vrsqrt.pop %v92
    %v95 = vrsqrt.pop %v93
    %v96 = vmul.f32 %v80, %v94
    %v97 = vmul.f32 %v81, %v95
    %v98 = vld [vmem:[%s1] sm:$0x1]
    %v100 = vlaneseq
    %v101 = vshrl.u32 %v100, 7
    %v102 = vsub.s32 0, %v101
    %v103 = vrot.slane %v98, %v102
    %v105 = vmul.f32 %v96, %v103
    %v106 = vmul.f32 %v97, %v103
    %v107 = vld [vmem:[%s2] sm:$0x1]
    %v109 = vlaneseq
    %v110 = vshrl.u32 %v109, 7
    %v111 = vsub.s32 0, %v110
    %v112 = vrot.slane %v107, %v111
    %v114 = vadd.f32 %v105, %v112
    %v115 = vadd.f32 %v106, %v112
    %v116 = vld [vmem:[#allocation6] sm:$0xff]
    %v117 = vld [vmem:[#allocation6 + $0x8] sm:$0xff]
    %v118 = vld [vmem:[#allocation6 + $0x10] sm:$0xff]
    %v119 = vld [vmem:[#allocation6 + $0x18] sm:$0xff]
    %v120 = vld [vmem:[%s4] sm:$0x1]
    %v122 = vlaneseq
    %v123 = vshrl.u32 %v122, 7
    %v124 = vsub.s32 0, %v123
    %v125 = vrot.slane %v120, %v124
    %v128 = vsel %vm70, %v114, 0
    %v131 = vsel %vm70, %v115, 0
    %133 = vmatprep.subr.mxu0 0.0
    %134 = vmatpush1.msra.mxu0 %v116
    %135 = vmatprep.subr.mxu0 0.0
    %136 = vmatpush1.msra.mxu0 %v117
    %137 = vmatprep.subr.mxu0 0.0
    %138 = vmatpush1.msra.mxu0 %v118
    %139 = vmatprep.subr.mxu0 0.0
    %140 = vmatpush1.msra.mxu0 %v119
    %141 = vmatprep.subr.mxu0 0.0
    %142 = vmatpush1.msra.mxu0 0.0
    %143 = vmatprep.subr.mxu0 0.0
    %144 = vmatpush1.msra.mxu0 0.0
    %145 = vmatprep.subr.mxu0 0.0
    %146 = vmatpush1.msra.mxu0 0.0
    %147 = vmatprep.subr.mxu0 0.0
    %148 = vmatpush1.msra.mxu0 0.0
    %149 = vmatprep.subr.mxu0 0.0
    %150 = vmatpush1.msra.mxu0 0.0
    %151 = vmatprep.subr.mxu0 0.0
    %152 = vmatpush1.msra.mxu0 0.0
    %153 = vmatprep.subr.mxu0 0.0
    %154 = vmatpush1.msra.mxu0 0.0
    %155 = vmatprep.subr.mxu0 0.0
    %156 = vmatpush1.msra.mxu0 0.0
    %157 = vmatprep.subr.mxu0 0.0
    %158 = vmatpush1.msra.mxu0 0.0
    %159 = vmatprep.subr.mxu0 0.0
    %160 = vmatpush1.msra.mxu0 0.0
    %161 = vmatprep.subr.mxu0 0.0
    %162 = vmatpush1.msra.mxu0 0.0
    %163 = vmatprep.subr.mxu0 0.0
    %164 = vmatpush1.msra.mxu0 0.0
    %165 = vmatprep.subr.mxu0 0.0
    %166 = vmatpush1.msra.mxu0 0.0
    %167 = vmatprep.subr.mxu0 0.0
    %168 = vmatpush1.msra.mxu0 0.0
    %169 = vmatprep.subr.mxu0 0.0
    %170 = vmatpush1.msra.mxu0 0.0
    %171 = vmatprep.subr.mxu0 0.0
    %172 = vmatpush1.msra.mxu0 0.0
    %173 = vmatprep.subr.mxu0 0.0
    %174 = vmatpush1.msra.mxu0 0.0
    %175 = vmatprep.subr.mxu0 0.0
    %176 = vmatpush1.msra.mxu0 0.0
    %177 = vmatprep.subr.mxu0 0.0
    %178 = vmatpush1.msra.mxu0 0.0
    %179 = vmatprep.subr.mxu0 0.0
    %180 = vmatpush1.msra.mxu0 0.0
    %181 = vmatprep.subr.mxu0 0.0
    %182 = vmatpush1.msra.mxu0 0.0
    %183 = vmatprep.subr.mxu0 0.0
    %184 = vmatpush1.msra.mxu0 0.0
    %185 = vmatprep.subr.mxu0 0.0
    %186 = vmatpush1.msra.mxu0 0.0
    %187 = vmatprep.subr.mxu0 0.0
    %188 = vmatpush1.msra.mxu0 0.0
    %189 = vmatprep.subr.mxu0 0.0
    %190 = vmatpush1.msra.mxu0 0.0
    %191 = vmatprep.subr.mxu0 0.0
    %192 = vmatpush1.msra.mxu0 0.0
    %193 = vmatprep.subr.mxu0 0.0
    %194 = vmatpush1.msra.mxu0 0.0
    %195 = vmatprep.subr.mxu0 0.0
    %196 = vmatpush1.msra.mxu0 0.0
    %197 = vmatprep.mubr.f32.mxu0 0.0
    %198 = vmatmul.mubr.f32.gmra.mrb[0].mxu0 %v128
    %v199 = vpop.f32.mrb[0].mxu0
    %v200 = vadd.f32 %v125, %v199
    %v201 = vpop.f32.mrb[0].mxu0
    %202 = vmatprep.mubr.f32.mxu0 0.0
    %203 = vmatmul.mubr.f32.gmra.mrb[0].mxu0 %v131
    %v204 = vpop.f32.mrb[0].mxu0
    %v205 = vadd.f32 %v125, %v204
    %v206 = vpop.f32.mrb[0].mxu0
    %207 = vdwg.mxu0
    %v208 = vmul.f32 %v200, 0.35355338
    %210 = vrot.lane.b32.xlu0 %v200, 96
    %v211 = vpop.permute.xlu0 %210
    %vm212 = vcmask 64512
    %v214 = vsel %vm212, %v208, 0
    %v216 = vsel %vm212, %v211, 0
    %218 = vmatprep.subr.mxu0 0.0
    %219 = vmatpush1.xpose.msra.mxu0 %v216
    %220 = vmatprep.subr.mxu0 0.0
    %221 = vmatpush1.xpose.msra.mxu0 0.0
    %222 = vmatprep.subr.mxu0 0.0
    %223 = vmatpush1.xpose.msra.mxu0 0.0
    %224 = vmatprep.subr.mxu0 0.0
    %225 = vmatpush1.xpose.msra.mxu0 0.0
    %226 = vmatprep.subr.mxu0 0.0
    %227 = vmatpush1.xpose.msra.mxu0 0.0
    %228 = vmatprep.subr.mxu0 0.0
    %229 = vmatpush1.xpose.msra.mxu0 0.0
    %230 = vmatprep.subr.mxu0 0.0
    %231 = vmatpush1.xpose.msra.mxu0 0.0
    %232 = vmatprep.subr.mxu0 0.0
    %233 = vmatpush1.xpose.msra.mxu0 0.0
    %234 = vmatprep.subr.mxu0 0.0
    %235 = vmatpush1.xpose.msra.mxu0 0.0
    %236 = vmatprep.subr.mxu0 0.0
    %237 = vmatpush1.xpose.msra.mxu0 0.0
    %238 = vmatprep.subr.mxu0 0.0
    %239 = vmatpush1.xpose.msra.mxu0 0.0
    %240 = vmatprep.subr.mxu0 0.0
    %241 = vmatpush1.xpose.msra.mxu0 0.0
    %242 = vmatprep.subr.mxu0 0.0
    %243 = vmatpush1.xpose.msra.mxu0 0.0
    %244 = vmatprep.subr.mxu0 0.0
    %245 = vmatpush1.xpose.msra.mxu0 0.0
    %246 = vmatprep.subr.mxu0 0.0
    %247 = vmatpush1.xpose.msra.mxu0 0.0
    %248 = vmatprep.subr.mxu0 0.0
    %249 = vmatpush1.xpose.msra.mxu0 0.0
    %250 = vmatprep.subr.mxu0 0.0
    %251 = vmatpush1.xpose.msra.mxu0 0.0
    %252 = vmatprep.subr.mxu0 0.0
    %253 = vmatpush1.xpose.msra.mxu0 0.0
    %254 = vmatprep.subr.mxu0 0.0
    %255 = vmatpush1.xpose.msra.mxu0 0.0
    %256 = vmatprep.subr.mxu0 0.0
    %257 = vmatpush1.xpose.msra.mxu0 0.0
    %258 = vmatprep.subr.mxu0 0.0
    %259 = vmatpush1.xpose.msra.mxu0 0.0
    %260 = vmatprep.subr.mxu0 0.0
    %261 = vmatpush1.xpose.msra.mxu0 0.0
    %262 = vmatprep.subr.mxu0 0.0
    %263 = vmatpush1.xpose.msra.mxu0 0.0
    %264 = vmatprep.subr.mxu0 0.0
    %265 = vmatpush1.xpose.msra.mxu0 0.0
    %266 = vmatprep.subr.mxu0 0.0
    %267 = vmatpush1.xpose.msra.mxu0 0.0
    %268 = vmatprep.subr.mxu0 0.0
    %269 = vmatpush1.xpose.msra.mxu0 0.0
    %270 = vmatprep.subr.mxu0 0.0
    %271 = vmatpush1.xpose.msra.mxu0 0.0
    %272 = vmatprep.subr.mxu0 0.0
    %273 = vmatpush1.xpose.msra.mxu0 0.0
    %274 = vmatprep.subr.mxu0 0.0
    %275 = vmatpush1.xpose.msra.mxu0 0.0
    %276 = vmatprep.subr.mxu0 0.0
    %277 = vmatpush1.xpose.msra.mxu0 0.0
    %278 = vmatprep.subr.mxu0 0.0
    %279 = vmatpush1.xpose.msra.mxu0 0.0
    %280 = vmatprep.subr.mxu0 0.0
    %281 = vmatpush1.xpose.msra.mxu0 0.0
    %282 = vmatprep.mubr.f32.mxu0 0.0
    %283 = vmatmul.mubr.f32.gmra.mrb[0].mxu0 %v214
    %v284 = vpop.f32.mrb[0].mxu0
    %v285 = vadd.f32 0.0, %v284
    %v286 = vpop.f32.mrb[0].mxu0
    %287 = vdwg.mxu0
    %v288 = vsel %vm212, %v285, -inf
    %289 = vmax.xlane.f32.xlu0 %v288
    %v290 = vpop.xlane.xlu0 %289
    %v291 = vsub.f32 %v285, %v290
    %v292 = vmul.f32 %v291, 1.442695
    %v293 = vpow.pop %v292
    %v294 = vsel %vm212, %v293, 0.0
    %295 = vadd.xlane.f32.xlu0 %v294
    %v296 = vpop.xlane.xlu0 %295
    %297 = vrot.lane.b32.xlu0 %v200, 64
    %v298 = vpop.permute.xlu0 %297
    %v301 = vsel %vm212, %v293, 0
    %303 = vmatprep.subr.mxu0 0.0
    %304 = vmatpush1.msra.mxu0 %v298
    %305 = vmatprep.subr.mxu0 0.0
    %306 = vmatpush1.msra.mxu0 0.0
    %307 = vmatprep.subr.mxu0 0.0
    %308 = vmatpush1.msra.mxu0 0.0
    %309 = vmatprep.subr.mxu0 0.0
    %310 = vmatpush1.msra.mxu0 0.0
    %311 = vmatprep.subr.mxu0 0.0
    %312 = vmatpush1.msra.mxu0 0.0
    %313 = vmatprep.subr.mxu0 0.0
    %314 = vmatpush1.msra.mxu0 0.0
    %315 = vmatprep.subr.mxu0 0.0
    %316 = vmatpush1.msra.mxu0 0.0
    %317 = vmatprep.subr.mxu0 0.0
    %318 = vmatpush1.msra.mxu0 0.0
    %319 = vmatprep.subr.mxu0 0.0
    %320 = vmatpush1.msra.mxu0 0.0
    %321 = vmatprep.subr.mxu0 0.0
    %322 = vmatpush1.msra.mxu0 0.0
    %323 = vmatprep.subr.mxu0 0.0
    %324 = vmatpush1.msra.mxu0 0.0
    %325 = vmatprep.subr.mxu0 0.0
    %326 = vmatpush1.msra.mxu0 0.0
    %327 = vmatprep.subr.mxu0 0.0
    %328 = vmatpush1.msra.mxu0 0.0
    %329 = vmatprep.subr.mxu0 0.0
    %330 = vmatpush1.msra.mxu0 0.0
    %331 = vmatprep.subr.mxu0 0.0
    %332 = vmatpush1.msra.mxu0 0.0
    %333 = vmatprep.subr.mxu0 0.0
    %334 = vmatpush1.msra.mxu0 0.0
    %335 = vmatprep.subr.mxu0 0.0
    %336 = vmatpush1.msra.mxu0 0.0
    %337 = vmatprep.subr.mxu0 0.0
    %338 = vmatpush1.msra.mxu0 0.0
    %339 = vmatprep.subr.mxu0 0.0
    %340 = vmatpush1.msra.mxu0 0.0
    %341 = vmatprep.subr.mxu0 0.0
    %342 = vmatpush1.msra.mxu0 0.0
    %343 = vmatprep.subr.mxu0 0.0
    %344 = vmatpush1.msra.mxu0 0.0
    %345 = vmatprep.subr.mxu0 0.0
    %346 = vmatpush1.msra.mxu0 0.0
    %347 = vmatprep.subr.mxu0 0.0
    %348 = vmatpush1.msra.mxu0 0.0
    %349 = vmatprep.subr.mxu0 0.0
    %350 = vmatpush1.msra.mxu0 0.0
    %351 = vmatprep.subr.mxu0 0.0
    %352 = vmatpush1.msra.mxu0 0.0
    %353 = vmatprep.subr.mxu0 0.0
    %354 = vmatpush1.msra.mxu0 0.0
    %355 = vmatprep.subr.mxu0 0.0
    %356 = vmatpush1.msra.mxu0 0.0
    %357 = vmatprep.subr.mxu0 0.0
    %358 = vmatpush1.msra.mxu0 0.0
    %359 = vmatprep.subr.mxu0 0.0
    %360 = vmatpush1.msra.mxu0 0.0
    %361 = vmatprep.subr.mxu0 0.0
    %362 = vmatpush1.msra.mxu0 0.0
    %363 = vmatprep.subr.mxu0 0.0
    %364 = vmatpush1.msra.mxu0 0.0
    %365 = vmatprep.subr.mxu0 0.0
    %366 = vmatpush1.msra.mxu0 0.0
    %367 = vmatprep.mubr.f32.mxu0 0.0
    %368 = vmatmul.mubr.f32.gmra.mrb[0].mxu0 %v301
    %v369 = vpop.f32.mrb[0].mxu0
    %v370 = vadd.f32 0.0, %v369
    %v371 = vpop.f32.mrb[0].mxu0
    %372 = vdwg.mxu0
    %v373 = vrcp.pop %v296
    %v374 = vmul.f32 %v370, %v373
    %375 = vst.msk [vmem:[#allocation2] sm:$0xff] %vm212, %v374
    %376 = vrot.lane.b32.xlu0 %v208, 120
    %v377 = vpop.permute.xlu0 %376
    %378 = vrot.lane.b32.xlu0 %v200, 88
    %v379 = vpop.permute.xlu0 %378
    %v380 = vsel %vm212, %v377, 0
    %v382 = vsel %vm212, %v379, 0
    %384 = vmatprep.subr.mxu0 0.0
    %385 = vmatpush1.xpose.msra.mxu0 %v382
    %386 = vmatprep.subr.mxu0 0.0
    %387 = vmatpush1.xpose.msra.mxu0 0.0
    %388 = vmatprep.subr.mxu0 0.0
    %389 = vmatpush1.xpose.msra.mxu0 0.0
    %390 = vmatprep.subr.mxu0 0.0
    %391 = vmatpush1.xpose.msra.mxu0 0.0
    %392 = vmatprep.subr.mxu0 0.0
    %393 = vmatpush1.xpose.msra.mxu0 0.0
    %394 = vmatprep.subr.mxu0 0.0
    %395 = vmatpush1.xpose.msra.mxu0 0.0
    %396 = vmatprep.subr.mxu0 0.0
    %397 = vmatpush1.xpose.msra.mxu0 0.0
    %398 = vmatprep.subr.mxu0 0.0
    %399 = vmatpush1.xpose.msra.mxu0 0.0
    %400 = vmatprep.subr.mxu0 0.0
    %401 = vmatpush1.xpose.msra.mxu0 0.0
    %402 = vmatprep.subr.mxu0 0.0
    %403 = vmatpush1.xpose.msra.mxu0 0.0
    %404 = vmatprep.subr.mxu0 0.0
    %405 = vmatpush1.xpose.msra.mxu0 0.0
    %406 = vmatprep.subr.mxu0 0.0
    %407 = vmatpush1.xpose.msra.mxu0 0.0
    %408 = vmatprep.subr.mxu0 0.0
    %409 = vmatpush1.xpose.msra.mxu0 0.0
    %410 = vmatprep.subr.mxu0 0.0
    %411 = vmatpush1.xpose.msra.mxu0 0.0
    %412 = vmatprep.subr.mxu0 0.0
    %413 = vmatpush1.xpose.msra.mxu0 0.0
    %414 = vmatprep.subr.mxu0 0.0
    %415 = vmatpush1.xpose.msra.mxu0 0.0
    %416 = vmatprep.subr.mxu0 0.0
    %417 = vmatpush1.xpose.msra.mxu0 0.0
    %418 = vmatprep.subr.mxu0 0.0
    %419 = vmatpush1.xpose.msra.mxu0 0.0
    %420 = vmatprep.subr.mxu0 0.0
    %421 = vmatpush1.xpose.msra.mxu0 0.0
    %422 = vmatprep.subr.mxu0 0.0
    %423 = vmatpush1.xpose.msra.mxu0 0.0
    %424 = vmatprep.subr.mxu0 0.0
    %425 = vmatpush1.xpose.msra.mxu0 0.0
    %426 = vmatprep.subr.mxu0 0.0
    %427 = vmatpush1.xpose.msra.mxu0 0.0
    %428 = vmatprep.subr.mxu0 0.0
    %429 = vmatpush1.xpose.msra.mxu0 0.0
    %430 = vmatprep.subr.mxu0 0.0
    %431 = vmatpush1.xpose.msra.mxu0 0.0
    %432 = vmatprep.subr.mxu0 0.0
    %433 = vmatpush1.xpose.msra.mxu0 0.0
    %434 = vmatprep.subr.mxu0 0.0
    %435 = vmatpush1.xpose.msra.mxu0 0.0
    %436 = vmatprep.subr.mxu0 0.0
    %437 = vmatpush1.xpose.msra.mxu0 0.0
    %438 = vmatprep.subr.mxu0 0.0
    %439 = vmatpush1.xpose.msra.mxu0 0.0
    %440 = vmatprep.subr.mxu0 0.0
    %441 = vmatpush1.xpose.msra.mxu0 0.0
    %442 = vmatprep.subr.mxu0 0.0
    %443 = vmatpush1.xpose.msra.mxu0 0.0
    %444 = vmatprep.subr.mxu0 0.0
    %445 = vmatpush1.xpose.msra.mxu0 0.0
    %446 = vmatprep.subr.mxu0 0.0
    %447 = vmatpush1.xpose.msra.mxu0 0.0
    %448 = vmatprep.mubr.f32.mxu0 0.0
    %449 = vmatmul.mubr.f32.gmra.mrb[0].mxu0 %v380
    %v450 = vpop.f32.mrb[0].mxu0
    %v451 = vadd.f32 0.0, %v450
    %v452 = vpop.f32.mrb[0].mxu0
    %453 = vdwg.mxu0
    %v454 = vsel %vm212, %v451, -inf
    %455 = vmax.xlane.f32.xlu0 %v454
    %v456 = vpop.xlane.xlu0 %455
    %v457 = vsub.f32 %v451, %v456
    %v458 = vmul.f32 %v457, 1.442695
    %v459 = vpow.pop %v458
    %v460 = vsel %vm212, %v459, 0.0
    %461 = vadd.xlane.f32.xlu0 %v460
    %v462 = vpop.xlane.xlu0 %461
    %463 = vrot.lane.b32.xlu0 %v200, 56
    %v464 = vpop.permute.xlu0 %463
    %v467 = vsel %vm212, %v459, 0
    %469 = vmatprep.subr.mxu0 0.0
    %470 = vmatpush1.msra.mxu0 %v464
    %471 = vmatprep.subr.mxu0 0.0
    %472 = vmatpush1.msra.mxu0 0.0
    %473 = vmatprep.subr.mxu0 0.0
    %474 = vmatpush1.msra.mxu0 0.0
    %475 = vmatprep.subr.mxu0 0.0
    %476 = vmatpush1.msra.mxu0 0.0
    %477 = vmatprep.subr.mxu0 0.0
    %478 = vmatpush1.msra.mxu0 0.0
    %479 = vmatprep.subr.mxu0 0.0
    %480 = vmatpush1.msra.mxu0 0.0
    %481 = vmatprep.subr.mxu0 0.0
    %482 = vmatpush1.msra.mxu0 0.0
    %483 = vmatprep.subr.mxu0 0.0
    %484 = vmatpush1.msra.mxu0 0.0
    %485 = vmatprep.subr.mxu0 0.0
    %486 = vmatpush1.msra.mxu0 0.0
    %487 = vmatprep.subr.mxu0 0.0
    %488 = vmatpush1.msra.mxu0 0.0
    %489 = vmatprep.subr.mxu0 0.0
    %490 = vmatpush1.msra.mxu0 0.0
    %491 = vmatprep.subr.mxu0 0.0
    %492 = vmatpush1.msra.mxu0 0.0
    %493 = vmatprep.subr.mxu0 0.0
    %494 = vmatpush1.msra.mxu0 0.0
    %495 = vmatprep.subr.mxu0 0.0
    %496 = vmatpush1.msra.mxu0 0.0
    %497 = vmatprep.subr.mxu0 0.0
    %498 = vmatpush1.msra.mxu0 0.0
    %499 = vmatprep.subr.mxu0 0.0
    %500 = vmatpush1.msra.mxu0 0.0
    %501 = vmatprep.subr.mxu0 0.0
    %502 = vmatpush1.msra.mxu0 0.0
    %503 = vmatprep.subr.mxu0 0.0
    %504 = vmatpush1.msra.mxu0 0.0
    %505 = vmatprep.subr.mxu0 0.0
    %506 = vmatpush1.msra.mxu0 0.0
    %507 = vmatprep.subr.mxu0 0.0
    %508 = vmatpush1.msra.mxu0 0.0
    %509 = vmatprep.subr.mxu0 0.0
    %510 = vmatpush1.msra.mxu0 0.0
    %511 = vmatprep.subr.mxu0 0.0
    %512 = vmatpush1.msra.mxu0 0.0
    %513 = vmatprep.subr.mxu0 0.0
    %514 = vmatpush1.msra.mxu0 0.0
    %515 = vmatprep.subr.mxu0 0.0
    %516 = vmatpush1.msra.mxu0 0.0
    %517 = vmatprep.subr.mxu0 0.0
    %518 = vmatpush1.msra.mxu0 0.0
    %519 = vmatprep.subr.mxu0 0.0
    %520 = vmatpush1.msra.mxu0 0.0
    %521 = vmatprep.subr.mxu0 0.0
    %522 = vmatpush1.msra.mxu0 0.0
    %523 = vmatprep.subr.mxu0 0.0
    %524 = vmatpush1.msra.mxu0 0.0
    %525 = vmatprep.subr.mxu0 0.0
    %526 = vmatpush1.msra.mxu0 0.0
    %527 = vmatprep.subr.mxu0 0.0
    %528 = vmatpush1.msra.mxu0 0.0
    %529 = vmatprep.subr.mxu0 0.0
    %530 = vmatpush1.msra.mxu0 0.0
    %531 = vmatprep.subr.mxu0 0.0
    %532 = vmatpush1.msra.mxu0 0.0
    %533 = vmatprep.mubr.f32.mxu0 0.0
    %534 = vmatmul.mubr.f32.gmra.mrb[0].mxu0 %v467
    %v535 = vpop.f32.mrb[0].mxu0
    %v536 = vadd.f32 0.0, %v535
    %v537 = vpop.f32.mrb[0].mxu0
    %538 = vdwg.mxu0
    %v539 = vrcp.pop %v462
    %v540 = vmul.f32 %v536, %v539
    %542 = vrot.lane.b32.xlu0 %v540, 8
    %v543 = vpop.permute.xlu0 %542
    %vm545 = vcmask 130112
    %546 = vst.msk [vmem:[#allocation2] sm:$0xff] %vm545, %v543
    %547 = vrot.lane.b32.xlu0 %v208, 112
    %v548 = vpop.permute.xlu0 %547
    %549 = vrot.lane.b32.xlu0 %v200, 80
    %v550 = vpop.permute.xlu0 %549
    %v551 = vsel %vm212, %v548, 0
    %v553 = vsel %vm212, %v550, 0
    %555 = vmatprep.subr.mxu0 0.0
    %556 = vmatpush1.xpose.msra.mxu0 %v553
    %557 = vmatprep.subr.mxu0 0.0
    %558 = vmatpush1.xpose.msra.mxu0 0.0
    %559 = vmatprep.subr.mxu0 0.0
    %560 = vmatpush1.xpose.msra.mxu0 0.0
    %561 = vmatprep.subr.mxu0 0.0
    %562 = vmatpush1.xpose.msra.mxu0 0.0
    %563 = vmatprep.subr.mxu0 0.0
    %564 = vmatpush1.xpose.msra.mxu0 0.0
    %565 = vmatprep.subr.mxu0 0.0
    %566 = vmatpush1.xpose.msra.mxu0 0.0
    %567 = vmatprep.subr.mxu0 0.0
    %568 = vmatpush1.xpose.msra.mxu0 0.0
    %569 = vmatprep.subr.mxu0 0.0
    %570 = vmatpush1.xpose.msra.mxu0 0.0
    %571 = vmatprep.subr.mxu0 0.0
    %572 = vmatpush1.xpose.msra.mxu0 0.0
    %573 = vmatprep.subr.mxu0 0.0
    %574 = vmatpush1.xpose.msra.mxu0 0.0
    %575 = vmatprep.subr.mxu0 0.0
    %576 = vmatpush1.xpose.msra.mxu0 0.0
    %577 = vmatprep.subr.mxu0 0.0
    %578 = vmatpush1.xpose.msra.mxu0 0.0
    %579 = vmatprep.subr.mxu0 0.0
    %580 = vmatpush1.xpose.msra.mxu0 0.0
    %581 = vmatprep.subr.mxu0 0.0
    %582 = vmatpush1.xpose.msra.mxu0 0.0
    %583 = vmatprep.subr.mxu0 0.0
    %584 = vmatpush1.xpose.msra.mxu0 0.0
    %585 = vmatprep.subr.mxu0 0.0
    %586 = vmatpush1.xpose.msra.mxu0 0.0
    %587 = vmatprep.subr.mxu0 0.0
    %588 = vmatpush1.xpose.msra.mxu0 0.0
    %589 = vmatprep.subr.mxu0 0.0
    %590 = vmatpush1.xpose.msra.mxu0 0.0
    %591 = vmatprep.subr.mxu0 0.0
    %592 = vmatpush1.xpose.msra.mxu0 0.0
    %593 = vmatprep.subr.mxu0 0.0
    %594 = vmatpush1.xpose.msra.mxu0 0.0
    %595 = vmatprep.subr.mxu0 0.0
    %596 = vmatpush1.xpose.msra.mxu0 0.0
    %597 = vmatprep.subr.mxu0 0.0
    %598 = vmatpush1.xpose.msra.mxu0 0.0
    %599 = vmatprep.subr.mxu0 0.0
    %600 = vmatpush1.xpose.msra.mxu0 0.0
    %601 = vmatprep.subr.mxu0 0.0
    %602 = vmatpush1.xpose.msra.mxu0 0.0
    %603 = vmatprep.subr.mxu0 0.0
    %604 = vmatpush1.xpose.msra.mxu0 0.0
    %605 = vmatprep.subr.mxu0 0.0
    %606 = vmatpush1.xpose.msra.mxu0 0.0
    %607 = vmatprep.subr.mxu0 0.0
    %608 = vmatpush1.xpose.msra.mxu0 0.0
    %609 = vmatprep.subr.mxu0 0.0
    %610 = vmatpush1.xpose.msra.mxu0 0.0
    %611 = vmatprep.subr.mxu0 0.0
    %612 = vmatpush1.xpose.msra.mxu0 0.0
    %613 = vmatprep.subr.mxu0 0.0
    %614 = vmatpush1.xpose.msra.mxu0 0.0
    %615 = vmatprep.subr.mxu0 0.0
    %616 = vmatpush1.xpose.msra.mxu0 0.0
    %617 = vmatprep.subr.mxu0 0.0
    %618 = vmatpush1.xpose.msra.mxu0 0.0
    %619 = vmatprep.mubr.f32.mxu0 0.0
    %620 = vmatmul.mubr.f32.gmra.mrb[0].mxu0 %v551
    %v621 = vpop.f32.mrb[0].mxu0
    %v622 = vadd.f32 0.0, %v621
    %v623 = vpop.f32.mrb[0].mxu0
    %624 = vdwg.mxu0
    %v625 = vsel %vm212, %v622, -inf
    %626 = vmax.xlane.f32.xlu0 %v625
    %v627 = vpop.xlane.xlu0 %626
    %v628 = vsub.f32 %v622, %v627
    %v629 = vmul.f32 %v628, 1.442695
    %v630 = vpow.pop %v629
    %v631 = vsel %vm212, %v630, 0.0
    %632 = vadd.xlane.f32.xlu0 %v631
    %v633 = vpop.xlane.xlu0 %632
    %634 = vrot.lane.b32.xlu0 %v200, 48
    %v635 = vpop.permute.xlu0 %634
    %v638 = vsel %vm212, %v630, 0
    %640 = vmatprep.subr.mxu0 0.0
    %641 = vmatpush1.msra.mxu0 %v635
    %642 = vmatprep.subr.mxu0 0.0
    %643 = vmatpush1.msra.mxu0 0.0
    %644 = vmatprep.subr.mxu0 0.0
    %645 = vmatpush1.msra.mxu0 0.0
    %646 = vmatprep.subr.mxu0 0.0
    %647 = vmatpush1.msra.mxu0 0.0
    %648 = vmatprep.subr.mxu0 0.0
    %649 = vmatpush1.msra.mxu0 0.0
    %650 = vmatprep.subr.mxu0 0.0
    %651 = vmatpush1.msra.mxu0 0.0
    %652 = vmatprep.subr.mxu0 0.0
    %653 = vmatpush1.msra.mxu0 0.0
    %654 = vmatprep.subr.mxu0 0.0
    %655 = vmatpush1.msra.mxu0 0.0
    %656 = vmatprep.subr.mxu0 0.0
    %657 = vmatpush1.msra.mxu0 0.0
    %658 = vmatprep.subr.mxu0 0.0
    %659 = vmatpush1.msra.mxu0 0.0
    %660 = vmatprep.subr.mxu0 0.0
    %661 = vmatpush1.msra.mxu0 0.0
    %662 = vmatprep.subr.mxu0 0.0
    %663 = vmatpush1.msra.mxu0 0.0
    %664 = vmatprep.subr.mxu0 0.0
    %665 = vmatpush1.msra.mxu0 0.0
    %666 = vmatprep.subr.mxu0 0.0
    %667 = vmatpush1.msra.mxu0 0.0
    %668 = vmatprep.subr.mxu0 0.0
    %669 = vmatpush1.msra.mxu0 0.0
    %670 = vmatprep.subr.mxu0 0.0
    %671 = vmatpush1.msra.mxu0 0.0
    %672 = vmatprep.subr.mxu0 0.0
    %673 = vmatpush1.msra.mxu0 0.0
    %674 = vmatprep.subr.mxu0 0.0
    %675 = vmatpush1.msra.mxu0 0.0
    %676 = vmatprep.subr.mxu0 0.0
    %677 = vmatpush1.msra.mxu0 0.0
    %678 = vmatprep.subr.mxu0 0.0
    %679 = vmatpush1.msra.mxu0 0.0
    %680 = vmatprep.subr.mxu0 0.0
    %681 = vmatpush1.msra.mxu0 0.0
    %682 = vmatprep.subr.mxu0 0.0
    %683 = vmatpush1.msra.mxu0 0.0
    %684 = vmatprep.subr.mxu0 0.0
    %685 = vmatpush1.msra.mxu0 0.0
    %686 = vmatprep.subr.mxu0 0.0
    %687 = vmatpush1.msra.mxu0 0.0
    %688 = vmatprep.subr.mxu0 0.0
    %689 = vmatpush1.msra.mxu0 0.0
    %690 = vmatprep.subr.mxu0 0.0
    %691 = vmatpush1.msra.mxu0 0.0
    %692 = vmatprep.subr.mxu0 0.0
    %693 = vmatpush1.msra.mxu0 0.0
    %694 = vmatprep.subr.mxu0 0.0
    %695 = vmatpush1.msra.mxu0 0.0
    %696 = vmatprep.subr.mxu0 0.0
    %697 = vmatpush1.msra.mxu0 0.0
    %698 = vmatprep.subr.mxu0 0.0
    %699 = vmatpush1.msra.mxu0 0.0
    %700 = vmatprep.subr.mxu0 0.0
    %701 = vmatpush1.msra.mxu0 0.0
    %702 = vmatprep.subr.mxu0 0.0
    %703 = vmatpush1.msra.mxu0 0.0
    %704 = vmatprep.mubr.f32.mxu0 0.0
    %705 = vmatmul.mubr.f32.gmra.mrb[0].mxu0 %v638
    %v706 = vpop.f32.mrb[0].mxu0
    %v707 = vadd.f32 0.0, %v706
    %v708 = vpop.f32.mrb[0].mxu0
    %709 = vdwg.mxu0
    %v710 = vrcp.pop %v633
    %v711 = vmul.f32 %v707, %v710
    %713 = vrot.lane.b32.xlu0 %v711, 16
    %v714 = vpop.permute.xlu0 %713
    %vm716 = vcmask 195712
    %717 = vst.msk [vmem:[#allocation2] sm:$0xff] %vm716, %v714
    %718 = vrot.lane.b32.xlu0 %v208, 104
    %v719 = vpop.permute.xlu0 %718
    %720 = vrot.lane.b32.xlu0 %v200, 72
    %v721 = vpop.permute.xlu0 %720
    %v722 = vsel %vm212, %v719, 0
    %v724 = vsel %vm212, %v721, 0
    %726 = vmatprep.subr.mxu0 0.0
    %727 = vmatpush1.xpose.msra.mxu0 %v724
    %728 = vmatprep.subr.mxu0 0.0
    %729 = vmatpush1.xpose.msra.mxu0 0.0
    %730 = vmatprep.subr.mxu0 0.0
    %731 = vmatpush1.xpose.msra.mxu0 0.0
    %732 = vmatprep.subr.mxu0 0.0
    %733 = vmatpush1.xpose.msra.mxu0 0.0
    %734 = vmatprep.subr.mxu0 0.0
    %735 = vmatpush1.xpose.msra.mxu0 0.0
    %736 = vmatprep.subr.mxu0 0.0
    %737 = vmatpush1.xpose.msra.mxu0 0.0
    %738 = vmatprep.subr.mxu0 0.0
    %739 = vmatpush1.xpose.msra.mxu0 0.0
    %740 = vmatprep.subr.mxu0 0.0
    %741 = vmatpush1.xpose.msra.mxu0 0.0
    %742 = vmatprep.subr.mxu0 0.0
    %743 = vmatpush1.xpose.msra.mxu0 0.0
    %744 = vmatprep.subr.mxu0 0.0
    %745 = vmatpush1.xpose.msra.mxu0 0.0
    %746 = vmatprep.subr.mxu0 0.0
    %747 = vmatpush1.xpose.msra.mxu0 0.0
    %748 = vmatprep.subr.mxu0 0.0
    %749 = vmatpush1.xpose.msra.mxu0 0.0
    %750 = vmatprep.subr.mxu0 0.0
    %751 = vmatpush1.xpose.msra.mxu0 0.0
    %752 = vmatprep.subr.mxu0 0.0
    %753 = vmatpush1.xpose.msra.mxu0 0.0
    %754 = vmatprep.subr.mxu0 0.0
    %755 = vmatpush1.xpose.msra.mxu0 0.0
    %756 = vmatprep.subr.mxu0 0.0
    %757 = vmatpush1.xpose.msra.mxu0 0.0
    %758 = vmatprep.subr.mxu0 0.0
    %759 = vmatpush1.xpose.msra.mxu0 0.0
    %760 = vmatprep.subr.mxu0 0.0
    %761 = vmatpush1.xpose.msra.mxu0 0.0
    %762 = vmatprep.subr.mxu0 0.0
    %763 = vmatpush1.xpose.msra.mxu0 0.0
    %764 = vmatprep.subr.mxu0 0.0
    %765 = vmatpush1.xpose.msra.mxu0 0.0
    %766 = vmatprep.subr.mxu0 0.0
    %767 = vmatpush1.xpose.msra.mxu0 0.0
    %768 = vmatprep.subr.mxu0 0.0
    %769 = vmatpush1.xpose.msra.mxu0 0.0
    %770 = vmatprep.subr.mxu0 0.0
    %771 = vmatpush1.xpose.msra.mxu0 0.0
    %772 = vmatprep.subr.mxu0 0.0
    %773 = vmatpush1.xpose.msra.mxu0 0.0
    %774 = vmatprep.subr.mxu0 0.0
    %775 = vmatpush1.xpose.msra.mxu0 0.0
    %776 = vmatprep.subr.mxu0 0.0
    %777 = vmatpush1.xpose.msra.mxu0 0.0
    %778 = vmatprep.subr.mxu0 0.0
    %779 = vmatpush1.xpose.msra.mxu0 0.0
    %780 = vmatprep.subr.mxu0 0.0
    %781 = vmatpush1.xpose.msra.mxu0 0.0
    %782 = vmatprep.subr.mxu0 0.0
    %783 = vmatpush1.xpose.msra.mxu0 0.0
    %784 = vmatprep.subr.mxu0 0.0
    %785 = vmatpush1.xpose.msra.mxu0 0.0
    %786 = vmatprep.subr.mxu0 0.0
    %787 = vmatpush1.xpose.msra.mxu0 0.0
    %788 = vmatprep.subr.mxu0 0.0
    %789 = vmatpush1.xpose.msra.mxu0 0.0
    %790 = vmatprep.mubr.f32.mxu0 0.0
    %791 = vmatmul.mubr.f32.gmra.mrb[0].mxu0 %v722
    %v792 = vpop.f32.mrb[0].mxu0
    %v793 = vadd.f32 0.0, %v792
    %v794 = vpop.f32.mrb[0].mxu0
    %795 = vdwg.mxu0
    %v796 = vsel %vm212, %v793, -inf
    %797 = vmax.xlane.f32.xlu0 %v796
    %v798 = vpop.xlane.xlu0 %797
    %v799 = vsub.f32 %v793, %v798
    %v800 = vmul.f32 %v799, 1.442695
    %v801 = vpow.pop %v800
    %v802 = vsel %vm212, %v801, 0.0
    %803 = vadd.xlane.f32.xlu0 %v802
    %v804 = vpop.xlane.xlu0 %803
    %805 = vrot.lane.b32.xlu0 %v200, 40
    %v806 = vpop.permute.xlu0 %805
    %v809 = vsel %vm212, %v801, 0
    %811 = vmatprep.subr.mxu0 0.0
    %812 = vmatpush1.msra.mxu0 %v806
    %813 = vmatprep.subr.mxu0 0.0
    %814 = vmatpush1.msra.mxu0 0.0
    %815 = vmatprep.subr.mxu0 0.0
    %816 = vmatpush1.msra.mxu0 0.0
    %817 = vmatprep.subr.mxu0 0.0
    %818 = vmatpush1.msra.mxu0 0.0
    %819 = vmatprep.subr.mxu0 0.0
    %820 = vmatpush1.msra.mxu0 0.0
    %821 = vmatprep.subr.mxu0 0.0
    %822 = vmatpush1.msra.mxu0 0.0
    %823 = vmatprep.subr.mxu0 0.0
    %824 = vmatpush1.msra.mxu0 0.0
    %825 = vmatprep.subr.mxu0 0.0
    %826 = vmatpush1.msra.mxu0 0.0
    %827 = vmatprep.subr.mxu0 0.0
    %828 = vmatpush1.msra.mxu0 0.0
    %829 = vmatprep.subr.mxu0 0.0
    %830 = vmatpush1.msra.mxu0 0.0
    %831 = vmatprep.subr.mxu0 0.0
    %832 = vmatpush1.msra.mxu0 0.0
    %833 = vmatprep.subr.mxu0 0.0
    %834 = vmatpush1.msra.mxu0 0.0
    %835 = vmatprep.subr.mxu0 0.0
    %836 = vmatpush1.msra.mxu0 0.0
    %837 = vmatprep.subr.mxu0 0.0
    %838 = vmatpush1.msra.mxu0 0.0
    %839 = vmatprep.subr.mxu0 0.0
    %840 = vmatpush1.msra.mxu0 0.0
    %841 = vmatprep.subr.mxu0 0.0
    %842 = vmatpush1.msra.mxu0 0.0
    %843 = vmatprep.subr.mxu0 0.0
    %844 = vmatpush1.msra.mxu0 0.0
    %845 = vmatprep.subr.mxu0 0.0
    %846 = vmatpush1.msra.mxu0 0.0
    %847 = vmatprep.subr.mxu0 0.0
    %848 = vmatpush1.msra.mxu0 0.0
    %849 = vmatprep.subr.mxu0 0.0
    %850 = vmatpush1.msra.mxu0 0.0
    %851 = vmatprep.subr.mxu0 0.0
    %852 = vmatpush1.msra.mxu0 0.0
    %853 = vmatprep.subr.mxu0 0.0
    %854 = vmatpush1.msra.mxu0 0.0
    %855 = vmatprep.subr.mxu0 0.0
    %856 = vmatpush1.msra.mxu0 0.0
    %857 = vmatprep.subr.mxu0 0.0
    %858 = vmatpush1.msra.mxu0 0.0
    %859 = vmatprep.subr.mxu0 0.0
    %860 = vmatpush1.msra.mxu0 0.0
    %861 = vmatprep.subr.mxu0 0.0
    %862 = vmatpush1.msra.mxu0 0.0
    %863 = vmatprep.subr.mxu0 0.0
    %864 = vmatpush1.msra.mxu0 0.0
    %865 = vmatprep.subr.mxu0 0.0
    %866 = vmatpush1.msra.mxu0 0.0
    %867 = vmatprep.subr.mxu0 0.0
    %868 = vmatpush1.msra.mxu0 0.0
    %869 = vmatprep.subr.mxu0 0.0
    %870 = vmatpush1.msra.mxu0 0.0
    %871 = vmatprep.subr.mxu0 0.0
    %872 = vmatpush1.msra.mxu0 0.0
    %873 = vmatprep.subr.mxu0 0.0
    %874 = vmatpush1.msra.mxu0 0.0
    %875 = vmatprep.mubr.f32.mxu0 0.0
    %876 = vmatmul.mubr.f32.gmra.mrb[0].mxu0 %v809
    %v877 = vpop.f32.mrb[0].mxu0
    %v878 = vadd.f32 0.0, %v877
    %v879 = vpop.f32.mrb[0].mxu0
    %880 = vdwg.mxu0
    %v881 = vrcp.pop %v804
    %v882 = vmul.f32 %v878, %v881
    %884 = vrot.lane.b32.xlu0 %v882, 24
    %v885 = vpop.permute.xlu0 %884
    %vm887 = vcmask 261312
    %888 = vst.msk [vmem:[#allocation2] sm:$0xff] %vm887, %v885
    %v889 = vmul.f32 %v205, 0.35355338
    %891 = vrot.lane.b32.xlu0 %v205, 96
    %v892 = vpop.permute.xlu0 %891
    %v894 = vsel %vm212, %v889, 0
    %v896 = vsel %vm212, %v892, 0
    %898 = vmatprep.subr.mxu0 0.0
    %899 = vmatpush1.xpose.msra.mxu0 %v896
    %900 = vmatprep.subr.mxu0 0.0
    %901 = vmatpush1.xpose.msra.mxu0 0.0
    %902 = vmatprep.subr.mxu0 0.0
    %903 = vmatpush1.xpose.msra.mxu0 0.0
    %904 = vmatprep.subr.mxu0 0.0
    %905 = vmatpush1.xpose.msra.mxu0 0.0
    %906 = vmatprep.subr.mxu0 0.0
    %907 = vmatpush1.xpose.msra.mxu0 0.0
    %908 = vmatprep.subr.mxu0 0.0
    %909 = vmatpush1.xpose.msra.mxu0 0.0
    %910 = vmatprep.subr.mxu0 0.0
    %911 = vmatpush1.xpose.msra.mxu0 0.0
    %912 = vmatprep.subr.mxu0 0.0
    %913 = vmatpush1.xpose.msra.mxu0 0.0
    %914 = vmatprep.subr.mxu0 0.0
    %915 = vmatpush1.xpose.msra.mxu0 0.0
    %916 = vmatprep.subr.mxu0 0.0
    %917 = vmatpush1.xpose.msra.mxu0 0.0
    %918 = vmatprep.subr.mxu0 0.0
    %919 = vmatpush1.xpose.msra.mxu0 0.0
    %920 = vmatprep.subr.mxu0 0.0
    %921 = vmatpush1.xpose.msra.mxu0 0.0
    %922 = vmatprep.subr.mxu0 0.0
    %923 = vmatpush1.xpose.msra.mxu0 0.0
    %924 = vmatprep.subr.mxu0 0.0
    %925 = vmatpush1.xpose.msra.mxu0 0.0
    %926 = vmatprep.subr.mxu0 0.0
    %927 = vmatpush1.xpose.msra.mxu0 0.0
    %928 = vmatprep.subr.mxu0 0.0
    %929 = vmatpush1.xpose.msra.mxu0 0.0
    %930 = vmatprep.subr.mxu0 0.0
    %931 = vmatpush1.xpose.msra.mxu0 0.0
    %932 = vmatprep.subr.mxu0 0.0
    %933 = vmatpush1.xpose.msra.mxu0 0.0
    %934 = vmatprep.subr.mxu0 0.0
    %935 = vmatpush1.xpose.msra.mxu0 0.0
    %936 = vmatprep.subr.mxu0 0.0
    %937 = vmatpush1.xpose.msra.mxu0 0.0
    %938 = vmatprep.subr.mxu0 0.0
    %939 = vmatpush1.xpose.msra.mxu0 0.0
    %940 = vmatprep.subr.mxu0 0.0
    %941 = vmatpush1.xpose.msra.mxu0 0.0
    %942 = vmatprep.subr.mxu0 0.0
    %943 = vmatpush1.xpose.msra.mxu0 0.0
    %944 = vmatprep.subr.mxu0 0.0
    %945 = vmatpush1.xpose.msra.mxu0 0.0
    %946 = vmatprep.subr.mxu0 0.0
    %947 = vmatpush1.xpose.msra.mxu0 0.0
    %948 = vmatprep.subr.mxu0 0.0
    %949 = vmatpush1.xpose.msra.mxu0 0.0
    %950 = vmatprep.subr.mxu0 0.0
    %951 = vmatpush1.xpose.msra.mxu0 0.0
    %952 = vmatprep.subr.mxu0 0.0
    %953 = vmatpush1.xpose.msra.mxu0 0.0
    %954 = vmatprep.subr.mxu0 0.0
    %955 = vmatpush1.xpose.msra.mxu0 0.0
    %956 = vmatprep.subr.mxu0 0.0
    %957 = vmatpush1.xpose.msra.mxu0 0.0
    %958 = vmatprep.subr.mxu0 0.0
    %959 = vmatpush1.xpose.msra.mxu0 0.0
    %960 = vmatprep.subr.mxu0 0.0
    %961 = vmatpush1.xpose.msra.mxu0 0.0
    %962 = vmatprep.mubr.f32.mxu0 0.0
    %963 = vmatmul.mubr.f32.gmra.mrb[0].mxu0 %v894
    %v964 = vpop.f32.mrb[0].mxu0
    %v965 = vadd.f32 0.0, %v964
    %v966 = vpop.f32.mrb[0].mxu0
    %967 = vdwg.mxu0
    %v968 = vsel %vm212, %v965, -inf
    %969 = vmax.xlane.f32.xlu0 %v968
    %v970 = vpop.xlane.xlu0 %969
    %v971 = vsub.f32 %v965, %v970
    %v972 = vmul.f32 %v971, 1.442695
    %v973 = vpow.pop %v972
    %v974 = vsel %vm212, %v973, 0.0
    %975 = vadd.xlane.f32.xlu0 %v974
    %v976 = vpop.xlane.xlu0 %975
    %977 = vrot.lane.b32.xlu0 %v205, 64
    %v978 = vpop.permute.xlu0 %977
    %v981 = vsel %vm212, %v973, 0
    %983 = vmatprep.subr.mxu0 0.0
    %984 = vmatpush1.msra.mxu0 %v978
    %985 = vmatprep.subr.mxu0 0.0
    %986 = vmatpush1.msra.mxu0 0.0
    %987 = vmatprep.subr.mxu0 0.0
    %988 = vmatpush1.msra.mxu0 0.0
    %989 = vmatprep.subr.mxu0 0.0
    %990 = vmatpush1.msra.mxu0 0.0
    %991 = vmatprep.subr.mxu0 0.0
    %992 = vmatpush1.msra.mxu0 0.0
    %993 = vmatprep.subr.mxu0 0.0
    %994 = vmatpush1.msra.mxu0 0.0
    %995 = vmatprep.subr.mxu0 0.0
    %996 = vmatpush1.msra.mxu0 0.0
    %997 = vmatprep.subr.mxu0 0.0
    %998 = vmatpush1.msra.mxu0 0.0
    %999 = vmatprep.subr.mxu0 0.0
    %1000 = vmatpush1.msra.mxu0 0.0
    %1001 = vmatprep.subr.mxu0 0.0
    %1002 = vmatpush1.msra.mxu0 0.0
    %1003 = vmatprep.subr.mxu0 0.0
    %1004 = vmatpush1.msra.mxu0 0.0
    %1005 = vmatprep.subr.mxu0 0.0
    %1006 = vmatpush1.msra.mxu0 0.0
    %1007 = vmatprep.subr.mxu0 0.0
    %1008 = vmatpush1.msra.mxu0 0.0
    %1009 = vmatprep.subr.mxu0 0.0
    %1010 = vmatpush1.msra.mxu0 0.0
    %1011 = vmatprep.subr.mxu0 0.0
    %1012 = vmatpush1.msra.mxu0 0.0
    %1013 = vmatprep.subr.mxu0 0.0
    %1014 = vmatpush1.msra.mxu0 0.0
    %1015 = vmatprep.subr.mxu0 0.0
    %1016 = vmatpush1.msra.mxu0 0.0
    %1017 = vmatprep.subr.mxu0 0.0
    %1018 = vmatpush1.msra.mxu0 0.0
    %1019 = vmatprep.subr.mxu0 0.0
    %1020 = vmatpush1.msra.mxu0 0.0
    %1021 = vmatprep.subr.mxu0 0.0
    %1022 = vmatpush1.msra.mxu0 0.0
    %1023 = vmatprep.subr.mxu0 0.0
    %1024 = vmatpush1.msra.mxu0 0.0
    %1025 = vmatprep.subr.mxu0 0.0
    %1026 = vmatpush1.msra.mxu0 0.0
    %1027 = vmatprep.subr.mxu0 0.0
    %1028 = vmatpush1.msra.mxu0 0.0
    %1029 = vmatprep.subr.mxu0 0.0
    %1030 = vmatpush1.msra.mxu0 0.0
    %1031 = vmatprep.subr.mxu0 0.0
    %1032 = vmatpush1.msra.mxu0 0.0
    %1033 = vmatprep.subr.mxu0 0.0
    %1034 = vmatpush1.msra.mxu0 0.0
    %1035 = vmatprep.subr.mxu0 0.0
    %1036 = vmatpush1.msra.mxu0 0.0
    %1037 = vmatprep.subr.mxu0 0.0
    %1038 = vmatpush1.msra.mxu0 0.0
    %1039 = vmatprep.subr.mxu0 0.0
    %1040 = vmatpush1.msra.mxu0 0.0
    %1041 = vmatprep.subr.mxu0 0.0
    %1042 = vmatpush1.msra.mxu0 0.0
    %1043 = vmatprep.subr.mxu0 0.0
    %1044 = vmatpush1.msra.mxu0 0.0
    %1045 = vmatprep.subr.mxu0 0.0
    %1046 = vmatpush1.msra.mxu0 0.0
    %1047 = vmatprep.mubr.f32.mxu0 0.0
    %1048 = vmatmul.mubr.f32.gmra.mrb[0].mxu0 %v981
    %v1049 = vpop.f32.mrb[0].mxu0
    %v1050 = vadd.f32 0.0, %v1049
    %v1051 = vpop.f32.mrb[0].mxu0
    %1052 = vdwg.mxu0
    %v1053 = vrcp.pop %v976
    %v1054 = vmul.f32 %v1050, %v1053
    %1055 = vst.msk [vmem:[#allocation2 + $0x8] sm:$0xff] %vm212, %v1054
    %1056 = vrot.lane.b32.xlu0 %v889, 120
    %v1057 = vpop.permute.xlu0 %1056
    %1058 = vrot.lane.b32.xlu0 %v205, 88
    %v1059 = vpop.permute.xlu0 %1058
    %v1060 = vsel %vm212, %v1057, 0
    %v1062 = vsel %vm212, %v1059, 0
    %1064 = vmatprep.subr.mxu0 0.0
    %1065 = vmatpush1.xpose.msra.mxu0 %v1062
    %1066 = vmatprep.subr.mxu0 0.0
    %1067 = vmatpush1.xpose.msra.mxu0 0.0
    %1068 = vmatprep.subr.mxu0 0.0
    %1069 = vmatpush1.xpose.msra.mxu0 0.0
    %1070 = vmatprep.subr.mxu0 0.0
    %1071 = vmatpush1.xpose.msra.mxu0 0.0
    %1072 = vmatprep.subr.mxu0 0.0
    %1073 = vmatpush1.xpose.msra.mxu0 0.0
    %1074 = vmatprep.subr.mxu0 0.0
    %1075 = vmatpush1.xpose.msra.mxu0 0.0
    %1076 = vmatprep.subr.mxu0 0.0
    %1077 = vmatpush1.xpose.msra.mxu0 0.0
    %1078 = vmatprep.subr.mxu0 0.0
    %1079 = vmatpush1.xpose.msra.mxu0 0.0
    %1080 = vmatprep.subr.mxu0 0.0
    %1081 = vmatpush1.xpose.msra.mxu0 0.0
    %1082 = vmatprep.subr.mxu0 0.0
    %1083 = vmatpush1.xpose.msra.mxu0 0.0
    %1084 = vmatprep.subr.mxu0 0.0
    %1085 = vmatpush1.xpose.msra.mxu0 0.0
    %1086 = vmatprep.subr.mxu0 0.0
    %1087 = vmatpush1.xpose.msra.mxu0 0.0
    %1088 = vmatprep.subr.mxu0 0.0
    %1089 = vmatpush1.xpose.msra.mxu0 0.0
    %1090 = vmatprep.subr.mxu0 0.0
    %1091 = vmatpush1.xpose.msra.mxu0 0.0
    %1092 = vmatprep.subr.mxu0 0.0
    %1093 = vmatpush1.xpose.msra.mxu0 0.0
    %1094 = vmatprep.subr.mxu0 0.0
    %1095 = vmatpush1.xpose.msra.mxu0 0.0
    %1096 = vmatprep.subr.mxu0 0.0
    %1097 = vmatpush1.xpose.msra.mxu0 0.0
    %1098 = vmatprep.subr.mxu0 0.0
    %1099 = vmatpush1.xpose.msra.mxu0 0.0
    %1100 = vmatprep.subr.mxu0 0.0
    %1101 = vmatpush1.xpose.msra.mxu0 0.0
    %1102 = vmatprep.subr.mxu0 0.0
    %1103 = vmatpush1.xpose.msra.mxu0 0.0
    %1104 = vmatprep.subr.mxu0 0.0
    %1105 = vmatpush1.xpose.msra.mxu0 0.0
    %1106 = vmatprep.subr.mxu0 0.0
    %1107 = vmatpush1.xpose.msra.mxu0 0.0
    %1108 = vmatprep.subr.mxu0 0.0
    %1109 = vmatpush1.xpose.msra.mxu0 0.0
    %1110 = vmatprep.subr.mxu0 0.0
    %1111 = vmatpush1.xpose.msra.mxu0 0.0
    %1112 = vmatprep.subr.mxu0 0.0
    %1113 = vmatpush1.xpose.msra.mxu0 0.0
    %1114 = vmatprep.subr.mxu0 0.0
    %1115 = vmatpush1.xpose.msra.mxu0 0.0
    %1116 = vmatprep.subr.mxu0 0.0
    %1117 = vmatpush1.xpose.msra.mxu0 0.0
    %1118 = vmatprep.subr.mxu0 0.0
    %1119 = vmatpush1.xpose.msra.mxu0 0.0
    %1120 = vmatprep.subr.mxu0 0.0
    %1121 = vmatpush1.xpose.msra.mxu0 0.0
    %1122 = vmatprep.subr.mxu0 0.0
    %1123 = vmatpush1.xpose.msra.mxu0 0.0
    %1124 = vmatprep.subr.mxu0 0.0
    %1125 = vmatpush1.xpose.msra.mxu0 0.0
    %1126 = vmatprep.subr.mxu0 0.0
    %1127 = vmatpush1.xpose.msra.mxu0 0.0
    %1128 = vmatprep.mubr.f32.mxu0 0.0
    %1129 = vmatmul.mubr.f32.gmra.mrb[0].mxu0 %v1060
    %v1130 = vpop.f32.mrb[0].mxu0
    %v1131 = vadd.f32 0.0, %v1130
    %v1132 = vpop.f32.mrb[0].mxu0
    %1133 = vdwg.mxu0
    %v1134 = vsel %vm212, %v1131, -inf
    %1135 = vmax.xlane.f32.xlu0 %v1134
    %v1136 = vpop.xlane.xlu0 %1135
    %v1137 = vsub.f32 %v1131, %v1136
    %v1138 = vmul.f32 %v1137, 1.442695
    %v1139 = vpow.pop %v1138
    %v1140 = vsel %vm212, %v1139, 0.0
    %1141 = vadd.xlane.f32.xlu0 %v1140
    %v1142 = vpop.xlane.xlu0 %1141
    %1143 = vrot.lane.b32.xlu0 %v205, 56
    %v1144 = vpop.permute.xlu0 %1143
    %v1147 = vsel %vm212, %v1139, 0
    %1149 = vmatprep.subr.mxu0 0.0
    %1150 = vmatpush1.msra.mxu0 %v1144
    %1151 = vmatprep.subr.mxu0 0.0
    %1152 = vmatpush1.msra.mxu0 0.0
    %1153 = vmatprep.subr.mxu0 0.0
    %1154 = vmatpush1.msra.mxu0 0.0
    %1155 = vmatprep.subr.mxu0 0.0
    %1156 = vmatpush1.msra.mxu0 0.0
    %1157 = vmatprep.subr.mxu0 0.0
    %1158 = vmatpush1.msra.mxu0 0.0
    %1159 = vmatprep.subr.mxu0 0.0
    %1160 = vmatpush1.msra.mxu0 0.0
    %1161 = vmatprep.subr.mxu0 0.0
    %1162 = vmatpush1.msra.mxu0 0.0
    %1163 = vmatprep.subr.mxu0 0.0
    %1164 = vmatpush1.msra.mxu0 0.0
    %1165 = vmatprep.subr.mxu0 0.0
    %1166 = vmatpush1.msra.mxu0 0.0
    %1167 = vmatprep.subr.mxu0 0.0
    %1168 = vmatpush1.msra.mxu0 0.0
    %1169 = vmatprep.subr.mxu0 0.0
    %1170 = vmatpush1.msra.mxu0 0.0
    %1171 = vmatprep.subr.mxu0 0.0
    %1172 = vmatpush1.msra.mxu0 0.0
    %1173 = vmatprep.subr.mxu0 0.0
    %1174 = vmatpush1.msra.mxu0 0.0
    %1175 = vmatprep.subr.mxu0 0.0
    %1176 = vmatpush1.msra.mxu0 0.0
    %1177 = vmatprep.subr.mxu0 0.0
    %1178 = vmatpush1.msra.mxu0 0.0
    %1179 = vmatprep.subr.mxu0 0.0
    %1180 = vmatpush1.msra.mxu0 0.0
    %1181 = vmatprep.subr.mxu0 0.0
    %1182 = vmatpush1.msra.mxu0 0.0
    %1183 = vmatprep.subr.mxu0 0.0
    %1184 = vmatpush1.msra.mxu0 0.0
    %1185 = vmatprep.subr.mxu0 0.0
    %1186 = vmatpush1.msra.mxu0 0.0
    %1187 = vmatprep.subr.mxu0 0.0
    %1188 = vmatpush1.msra.mxu0 0.0
    %1189 = vmatprep.subr.mxu0 0.0
    %1190 = vmatpush1.msra.mxu0 0.0
    %1191 = vmatprep.subr.mxu0 0.0
    %1192 = vmatpush1.msra.mxu0 0.0
    %1193 = vmatprep.subr.mxu0 0.0
    %1194 = vmatpush1.msra.mxu0 0.0
    %1195 = vmatprep.subr.mxu0 0.0
    %1196 = vmatpush1.msra.mxu0 0.0
    %1197 = vmatprep.subr.mxu0 0.0
    %1198 = vmatpush1.msra.mxu0 0.0
    %1199 = vmatprep.subr.mxu0 0.0
    %1200 = vmatpush1.msra.mxu0 0.0
    %1201 = vmatprep.subr.mxu0 0.0
    %1202 = vmatpush1.msra.mxu0 0.0
    %1203 = vmatprep.subr.mxu0 0.0
    %1204 = vmatpush1.msra.mxu0 0.0
    %1205 = vmatprep.subr.mxu0 0.0
    %1206 = vmatpush1.msra.mxu0 0.0
    %1207 = vmatprep.subr.mxu0 0.0
    %1208 = vmatpush1.msra.mxu0 0.0
    %1209 = vmatprep.subr.mxu0 0.0
    %1210 = vmatpush1.msra.mxu0 0.0
    %1211 = vmatprep.subr.mxu0 0.0
    %1212 = vmatpush1.msra.mxu0 0.0
    %1213 = vmatprep.mubr.f32.mxu0 0.0
    %1214 = vmatmul.mubr.f32.gmra.mrb[0].mxu0 %v1147
    %v1215 = vpop.f32.mrb[0].mxu0
    %v1216 = vadd.f32 0.0, %v1215
    %v1217 = vpop.f32.mrb[0].mxu0
    %1218 = vdwg.mxu0
    %v1219 = vrcp.pop %v1142
    %v1220 = vmul.f32 %v1216, %v1219
    %1222 = vrot.lane.b32.xlu0 %v1220, 8
    %v1223 = vpop.permute.xlu0 %1222
    %1225 = vst.msk [vmem:[#allocation2 + $0x8] sm:$0xff] %vm545, %v1223
    %1226 = vrot.lane.b32.xlu0 %v889, 112
    %v1227 = vpop.permute.xlu0 %1226
    %1228 = vrot.lane.b32.xlu0 %v205, 80
    %v1229 = vpop.permute.xlu0 %1228
    %v1230 = vsel %vm212, %v1227, 0
    %v1232 = vsel %vm212, %v1229, 0
    %1234 = vmatprep.subr.mxu0 0.0
    %1235 = vmatpush1.xpose.msra.mxu0 %v1232
    %1236 = vmatprep.subr.mxu0 0.0
    %1237 = vmatpush1.xpose.msra.mxu0 0.0
    %1238 = vmatprep.subr.mxu0 0.0
    %1239 = vmatpush1.xpose.msra.mxu0 0.0
    %1240 = vmatprep.subr.mxu0 0.0
    %1241 = vmatpush1.xpose.msra.mxu0 0.0
    %1242 = vmatprep.subr.mxu0 0.0
    %1243 = vmatpush1.xpose.msra.mxu0 0.0
    %1244 = vmatprep.subr.mxu0 0.0
    %1245 = vmatpush1.xpose.msra.mxu0 0.0
    %1246 = vmatprep.subr.mxu0 0.0
    %1247 = vmatpush1.xpose.msra.mxu0 0.0
    %1248 = vmatprep.subr.mxu0 0.0
    %1249 = vmatpush1.xpose.msra.mxu0 0.0
    %1250 = vmatprep.subr.mxu0 0.0
    %1251 = vmatpush1.xpose.msra.mxu0 0.0
    %1252 = vmatprep.subr.mxu0 0.0
    %1253 = vmatpush1.xpose.msra.mxu0 0.0
    %1254 = vmatprep.subr.mxu0 0.0
    %1255 = vmatpush1.xpose.msra.mxu0 0.0
    %1256 = vmatprep.subr.mxu0 0.0
    %1257 = vmatpush1.xpose.msra.mxu0 0.0
    %1258 = vmatprep.subr.mxu0 0.0
    %1259 = vmatpush1.xpose.msra.mxu0 0.0
    %1260 = vmatprep.subr.mxu0 0.0
    %1261 = vmatpush1.xpose.msra.mxu0 0.0
    %1262 = vmatprep.subr.mxu0 0.0
    %1263 = vmatpush1.xpose.msra.mxu0 0.0
    %1264 = vmatprep.subr.mxu0 0.0
    %1265 = vmatpush1.xpose.msra.mxu0 0.0
    %1266 = vmatprep.subr.mxu0 0.0
    %1267 = vmatpush1.xpose.msra.mxu0 0.0
    %1268 = vmatprep.subr.mxu0 0.0
    %1269 = vmatpush1.xpose.msra.mxu0 0.0
    %1270 = vmatprep.subr.mxu0 0.0
    %1271 = vmatpush1.xpose.msra.mxu0 0.0
    %1272 = vmatprep.subr.mxu0 0.0
    %1273 = vmatpush1.xpose.msra.mxu0 0.0
    %1274 = vmatprep.subr.mxu0 0.0
    %1275 = vmatpush1.xpose.msra.mxu0 0.0
    %1276 = vmatprep.subr.mxu0 0.0
    %1277 = vmatpush1.xpose.msra.mxu0 0.0
    %1278 = vmatprep.subr.mxu0 0.0
    %1279 = vmatpush1.xpose.msra.mxu0 0.0
    %1280 = vmatprep.subr.mxu0 0.0
    %1281 = vmatpush1.xpose.msra.mxu0 0.0
    %1282 = vmatprep.subr.mxu0 0.0
    %1283 = vmatpush1.xpose.msra.mxu0 0.0
    %1284 = vmatprep.subr.mxu0 0.0
    %1285 = vmatpush1.xpose.msra.mxu0 0.0
    %1286 = vmatprep.subr.mxu0 0.0
    %1287 = vmatpush1.xpose.msra.mxu0 0.0
    %1288 = vmatprep.subr.mxu0 0.0
    %1289 = vmatpush1.xpose.msra.mxu0 0.0
    %1290 = vmatprep.subr.mxu0 0.0
    %1291 = vmatpush1.xpose.msra.mxu0 0.0
    %1292 = vmatprep.subr.mxu0 0.0
    %1293 = vmatpush1.xpose.msra.mxu0 0.0
    %1294 = vmatprep.subr.mxu0 0.0
    %1295 = vmatpush1.xpose.msra.mxu0 0.0
    %1296 = vmatprep.subr.mxu0 0.0
    %1297 = vmatpush1.xpose.msra.mxu0 0.0
    %1298 = vmatprep.mubr.f32.mxu0 0.0
    %1299 = vmatmul.mubr.f32.gmra.mrb[0].mxu0 %v1230
    %v1300 = vpop.f32.mrb[0].mxu0
    %v1301 = vadd.f32 0.0, %v1300
    %v1302 = vpop.f32.mrb[0].mxu0
    %1303 = vdwg.mxu0
    %v1304 = vsel %vm212, %v1301, -inf
    %1305 = vmax.xlane.f32.xlu0 %v1304
    %v1306 = vpop.xlane.xlu0 %1305
    %v1307 = vsub.f32 %v1301, %v1306
    %v1308 = vmul.f32 %v1307, 1.442695
    %v1309 = vpow.pop %v1308
    %v1310 = vsel %vm212, %v1309, 0.0
    %1311 = vadd.xlane.f32.xlu0 %v1310
    %v1312 = vpop.xlane.xlu0 %1311
    %1313 = vrot.lane.b32.xlu0 %v205, 48
    %v1314 = vpop.permute.xlu0 %1313
    %v1317 = vsel %vm212, %v1309, 0
    %1319 = vmatprep.subr.mxu0 0.0
    %1320 = vmatpush1.msra.mxu0 %v1314
    %1321 = vmatprep.subr.mxu0 0.0
    %1322 = vmatpush1.msra.mxu0 0.0
    %1323 = vmatprep.subr.mxu0 0.0
    %1324 = vmatpush1.msra.mxu0 0.0
    %1325 = vmatprep.subr.mxu0 0.0
    %1326 = vmatpush1.msra.mxu0 0.0
    %1327 = vmatprep.subr.mxu0 0.0
    %1328 = vmatpush1.msra.mxu0 0.0
    %1329 = vmatprep.subr.mxu0 0.0
    %1330 = vmatpush1.msra.mxu0 0.0
    %1331 = vmatprep.subr.mxu0 0.0
    %1332 = vmatpush1.msra.mxu0 0.0
    %1333 = vmatprep.subr.mxu0 0.0
    %1334 = vmatpush1.msra.mxu0 0.0
    %1335 = vmatprep.subr.mxu0 0.0
    %1336 = vmatpush1.msra.mxu0 0.0
    %1337 = vmatprep.subr.mxu0 0.0
    %1338 = vmatpush1.msra.mxu0 0.0
    %1339 = vmatprep.subr.mxu0 0.0
    %1340 = vmatpush1.msra.mxu0 0.0
    %1341 = vmatprep.subr.mxu0 0.0
    %1342 = vmatpush1.msra.mxu0 0.0
    %1343 = vmatprep.subr.mxu0 0.0
    %1344 = vmatpush1.msra.mxu0 0.0
    %1345 = vmatprep.subr.mxu0 0.0
    %1346 = vmatpush1.msra.mxu0 0.0
    %1347 = vmatprep.subr.mxu0 0.0
    %1348 = vmatpush1.msra.mxu0 0.0
    %1349 = vmatprep.subr.mxu0 0.0
    %1350 = vmatpush1.msra.mxu0 0.0
    %1351 = vmatprep.subr.mxu0 0.0
    %1352 = vmatpush1.msra.mxu0 0.0
    %1353 = vmatprep.subr.mxu0 0.0
    %1354 = vmatpush1.msra.mxu0 0.0
    %1355 = vmatprep.subr.mxu0 0.0
    %1356 = vmatpush1.msra.mxu0 0.0
    %1357 = vmatprep.subr.mxu0 0.0
    %1358 = vmatpush1.msra.mxu0 0.0
    %1359 = vmatprep.subr.mxu0 0.0
    %1360 = vmatpush1.msra.mxu0 0.0
    %1361 = vmatprep.subr.mxu0 0.0
    %1362 = vmatpush1.msra.mxu0 0.0
    %1363 = vmatprep.subr.mxu0 0.0
    %1364 = vmatpush1.msra.mxu0 0.0
    %1365 = vmatprep.subr.mxu0 0.0
    %1366 = vmatpush1.msra.mxu0 0.0
    %1367 = vmatprep.subr.mxu0 0.0
    %1368 = vmatpush1.msra.mxu0 0.0
    %1369 = vmatprep.subr.mxu0 0.0
    %1370 = vmatpush1.msra.mxu0 0.0
    %1371 = vmatprep.subr.mxu0 0.0
    %1372 = vmatpush1.msra.mxu0 0.0
    %1373 = vmatprep.subr.mxu0 0.0
    %1374 = vmatpush1.msra.mxu0 0.0
    %1375 = vmatprep.subr.mxu0 0.0
    %1376 = vmatpush1.msra.mxu0 0.0
    %1377 = vmatprep.subr.mxu0 0.0
    %1378 = vmatpush1.msra.mxu0 0.0
    %1379 = vmatprep.subr.mxu0 0.0
    %1380 = vmatpush1.msra.mxu0 0.0
    %1381 = vmatprep.subr.mxu0 0.0
    %1382 = vmatpush1.msra.mxu0 0.0
    %1383 = vmatprep.mubr.f32.mxu0 0.0
    %1384 = vmatmul.mubr.f32.gmra.mrb[0].mxu0 %v1317
    %v1385 = vpop.f32.mrb[0].mxu0
    %v1386 = vadd.f32 0.0, %v1385
    %v1387 = vpop.f32.mrb[0].mxu0
    %1388 = vdwg.mxu0
    %v1389 = vrcp.pop %v1312
    %v1390 = vmul.f32 %v1386, %v1389
    %1392 = vrot.lane.b32.xlu0 %v1390, 16
    %v1393 = vpop.permute.xlu0 %1392
    %1395 = vst.msk [vmem:[#allocation2 + $0x8] sm:$0xff] %vm716, %v1393
    %1396 = vrot.lane.b32.xlu0 %v889, 104
    %v1397 = vpop.permute.xlu0 %1396
    %1398 = vrot.lane.b32.xlu0 %v205, 72
    %v1399 = vpop.permute.xlu0 %1398
    %v1400 = vsel %vm212, %v1397, 0
    %v1402 = vsel %vm212, %v1399, 0
    %1404 = vmatprep.subr.mxu0 0.0
    %1405 = vmatpush1.xpose.msra.mxu0 %v1402
    %1406 = vmatprep.subr.mxu0 0.0
    %1407 = vmatpush1.xpose.msra.mxu0 0.0
    %1408 = vmatprep.subr.mxu0 0.0
    %1409 = vmatpush1.xpose.msra.mxu0 0.0
    %1410 = vmatprep.subr.mxu0 0.0
    %1411 = vmatpush1.xpose.msra.mxu0 0.0
    %1412 = vmatprep.subr.mxu0 0.0
    %1413 = vmatpush1.xpose.msra.mxu0 0.0
    %1414 = vmatprep.subr.mxu0 0.0
    %1415 = vmatpush1.xpose.msra.mxu0 0.0
    %1416 = vmatprep.subr.mxu0 0.0
    %1417 = vmatpush1.xpose.msra.mxu0 0.0
    %1418 = vmatprep.subr.mxu0 0.0
    %1419 = vmatpush1.xpose.msra.mxu0 0.0
    %1420 = vmatprep.subr.mxu0 0.0
    %1421 = vmatpush1.xpose.msra.mxu0 0.0
    %1422 = vmatprep.subr.mxu0 0.0
    %1423 = vmatpush1.xpose.msra.mxu0 0.0
    %1424 = vmatprep.subr.mxu0 0.0
    %1425 = vmatpush1.xpose.msra.mxu0 0.0
    %1426 = vmatprep.subr.mxu0 0.0
    %1427 = vmatpush1.xpose.msra.mxu0 0.0
    %1428 = vmatprep.subr.mxu0 0.0
    %1429 = vmatpush1.xpose.msra.mxu0 0.0
    %1430 = vmatprep.subr.mxu0 0.0
    %1431 = vmatpush1.xpose.msra.mxu0 0.0
    %1432 = vmatprep.subr.mxu0 0.0
    %1433 = vmatpush1.xpose.msra.mxu0 0.0
    %1434 = vmatprep.subr.mxu0 0.0
    %1435 = vmatpush1.xpose.msra.mxu0 0.0
    %1436 = vmatprep.subr.mxu0 0.0
    %1437 = vmatpush1.xpose.msra.mxu0 0.0
    %1438 = vmatprep.subr.mxu0 0.0
    %1439 = vmatpush1.xpose.msra.mxu0 0.0
    %1440 = vmatprep.subr.mxu0 0.0
    %1441 = vmatpush1.xpose.msra.mxu0 0.0
    %1442 = vmatprep.subr.mxu0 0.0
    %1443 = vmatpush1.xpose.msra.mxu0 0.0
    %1444 = vmatprep.subr.mxu0 0.0
    %1445 = vmatpush1.xpose.msra.mxu0 0.0
    %1446 = vmatprep.subr.mxu0 0.0
    %1447 = vmatpush1.xpose.msra.mxu0 0.0
    %1448 = vmatprep.subr.mxu0 0.0
    %1449 = vmatpush1.xpose.msra.mxu0 0.0
    %1450 = vmatprep.subr.mxu0 0.0
    %1451 = vmatpush1.xpose.msra.mxu0 0.0
    %1452 = vmatprep.subr.mxu0 0.0
    %1453 = vmatpush1.xpose.msra.mxu0 0.0
    %1454 = vmatprep.subr.mxu0 0.0
    %1455 = vmatpush1.xpose.msra.mxu0 0.0
    %1456 = vmatprep.subr.mxu0 0.0
    %1457 = vmatpush1.xpose.msra.mxu0 0.0
    %1458 = vmatprep.subr.mxu0 0.0
    %1459 = vmatpush1.xpose.msra.mxu0 0.0
    %1460 = vmatprep.subr.mxu0 0.0
    %1461 = vmatpush1.xpose.msra.mxu0 0.0
    %1462 = vmatprep.subr.mxu0 0.0
    %1463 = vmatpush1.xpose.msra.mxu0 0.0
    %1464 = vmatprep.subr.mxu0 0.0
    %1465 = vmatpush1.xpose.msra.mxu0 0.0
    %1466 = vmatprep.subr.mxu0 0.0
    %1467 = vmatpush1.xpose.msra.mxu0 0.0
    %1468 = vmatprep.mubr.f32.mxu0 0.0
    %1469 = vmatmul.mubr.f32.gmra.mrb[0].mxu0 %v1400
    %v1470 = vpop.f32.mrb[0].mxu0
    %v1471 = vadd.f32 0.0, %v1470
    %v1472 = vpop.f32.mrb[0].mxu0
    %1473 = vdwg.mxu0
    %v1474 = vsel %vm212, %v1471, -inf
    %1475 = vmax.xlane.f32.xlu0 %v1474
    %v1476 = vpop.xlane.xlu0 %1475
    %v1477 = vsub.f32 %v1471, %v1476
    %v1478 = vmul.f32 %v1477, 1.442695
    %v1479 = vpow.pop %v1478
    %v1480 = vsel %vm212, %v1479, 0.0
    %1481 = vadd.xlane.f32.xlu0 %v1480
    %v1482 = vpop.xlane.xlu0 %1481
    %1483 = vrot.lane.b32.xlu0 %v205, 40
    %v1484 = vpop.permute.xlu0 %1483
    %v1487 = vsel %vm212, %v1479, 0
    %1489 = vmatprep.subr.mxu0 0.0
    %1490 = vmatpush1.msra.mxu0 %v1484
    %1491 = vmatprep.subr.mxu0 0.0
    %1492 = vmatpush1.msra.mxu0 0.0
    %1493 = vmatprep.subr.mxu0 0.0
    %1494 = vmatpush1.msra.mxu0 0.0
    %1495 = vmatprep.subr.mxu0 0.0
    %1496 = vmatpush1.msra.mxu0 0.0
    %1497 = vmatprep.subr.mxu0 0.0
    %1498 = vmatpush1.msra.mxu0 0.0
    %1499 = vmatprep.subr.mxu0 0.0
    %1500 = vmatpush1.msra.mxu0 0.0
    %1501 = vmatprep.subr.mxu0 0.0
    %1502 = vmatpush1.msra.mxu0 0.0
    %1503 = vmatprep.subr.mxu0 0.0
    %1504 = vmatpush1.msra.mxu0 0.0
    %1505 = vmatprep.subr.mxu0 0.0
    %1506 = vmatpush1.msra.mxu0 0.0
    %1507 = vmatprep.subr.mxu0 0.0
    %1508 = vmatpush1.msra.mxu0 0.0
    %1509 = vmatprep.subr.mxu0 0.0
    %1510 = vmatpush1.msra.mxu0 0.0
    %1511 = vmatprep.subr.mxu0 0.0
    %1512 = vmatpush1.msra.mxu0 0.0
    %1513 = vmatprep.subr.mxu0 0.0
    %1514 = vmatpush1.msra.mxu0 0.0
    %1515 = vmatprep.subr.mxu0 0.0
    %1516 = vmatpush1.msra.mxu0 0.0
    %1517 = vmatprep.subr.mxu0 0.0
    %1518 = vmatpush1.msra.mxu0 0.0
    %1519 = vmatprep.subr.mxu0 0.0
    %1520 = vmatpush1.msra.mxu0 0.0
    %1521 = vmatprep.subr.mxu0 0.0
    %1522 = vmatpush1.msra.mxu0 0.0
    %1523 = vmatprep.subr.mxu0 0.0
    %1524 = vmatpush1.msra.mxu0 0.0
    %1525 = vmatprep.subr.mxu0 0.0
    %1526 = vmatpush1.msra.mxu0 0.0
    %1527 = vmatprep.subr.mxu0 0.0
    %1528 = vmatpush1.msra.mxu0 0.0
    %1529 = vmatprep.subr.mxu0 0.0
    %1530 = vmatpush1.msra.mxu0 0.0
    %1531 = vmatprep.subr.mxu0 0.0
    %1532 = vmatpush1.msra.mxu0 0.0
    %1533 = vmatprep.subr.mxu0 0.0
    %1534 = vmatpush1.msra.mxu0 0.0
    %1535 = vmatprep.subr.mxu0 0.0
    %1536 = vmatpush1.msra.mxu0 0.0
    %1537 = vmatprep.subr.mxu0 0.0
    %1538 = vmatpush1.msra.mxu0 0.0
    %1539 = vmatprep.subr.mxu0 0.0
    %1540 = vmatpush1.msra.mxu0 0.0
    %1541 = vmatprep.subr.mxu0 0.0
    %1542 = vmatpush1.msra.mxu0 0.0
    %1543 = vmatprep.subr.mxu0 0.0
    %1544 = vmatpush1.msra.mxu0 0.0
    %1545 = vmatprep.subr.mxu0 0.0
    %1546 = vmatpush1.msra.mxu0 0.0
    %1547 = vmatprep.subr.mxu0 0.0
    %1548 = vmatpush1.msra.mxu0 0.0
    %1549 = vmatprep.subr.mxu0 0.0
    %1550 = vmatpush1.msra.mxu0 0.0
    %1551 = vmatprep.subr.mxu0 0.0
    %1552 = vmatpush1.msra.mxu0 0.0
    %1553 = vmatprep.mubr.f32.mxu0 0.0
    %1554 = vmatmul.mubr.f32.gmra.mrb[0].mxu0 %v1487
    %v1555 = vpop.f32.mrb[0].mxu0
    %v1556 = vadd.f32 0.0, %v1555
    %v1557 = vpop.f32.mrb[0].mxu0
    %1558 = vdwg.mxu0
    %v1559 = vrcp.pop %v1482
    %v1560 = vmul.f32 %v1556, %v1559
    %1562 = vrot.lane.b32.xlu0 %v1560, 24
    %v1563 = vpop.permute.xlu0 %1562
    %1565 = vst.msk [vmem:[#allocation2 + $0x8] sm:$0xff] %vm887, %v1563
    %v1566 = vld [vmem:[#allocation2] sm:$0xff]
    %v1567 = vld [vmem:[#allocation2 + $0x8] sm:$0xff]
    %v1568 = vld [vmem:[#allocation8] sm:$0xff]
    %v1569 = vld [vmem:[#allocation8 + $0x8] sm:$0xff]
    %v1570 = vld [vmem:[#allocation8 + $0x10] sm:$0xff]
    %v1571 = vld [vmem:[#allocation8 + $0x18] sm:$0xff]
    %v1572 = vld [vmem:[%s6] sm:$0x1]
    %v1574 = vlaneseq
    %v1575 = vshrl.u32 %v1574, 7
    %v1576 = vsub.s32 0, %v1575
    %v1577 = vrot.slane %v1572, %v1576
    %v1580 = vsel %vm70, %v1566, 0
    %v1583 = vsel %vm70, %v1567, 0
    %1585 = vmatprep.subr.mxu0 0.0
    %1586 = vmatpush1.msra.mxu0 %v1568
    %1587 = vmatprep.subr.mxu0 0.0
    %1588 = vmatpush1.msra.mxu0 %v1569
    %1589 = vmatprep.subr.mxu0 0.0
    %1590 = vmatpush1.msra.mxu0 %v1570
    %1591 = vmatprep.subr.mxu0 0.0
    %1592 = vmatpush1.msra.mxu0 %v1571
    %1593 = vmatprep.subr.mxu0 0.0
    %1594 = vmatpush1.msra.mxu0 0.0
    %1595 = vmatprep.subr.mxu0 0.0
    %1596 = vmatpush1.msra.mxu0 0.0
    %1597 = vmatprep.subr.mxu0 0.0
    %1598 = vmatpush1.msra.mxu0 0.0
    %1599 = vmatprep.subr.mxu0 0.0
    %1600 = vmatpush1.msra.mxu0 0.0
    %1601 = vmatprep.subr.mxu0 0.0
    %1602 = vmatpush1.msra.mxu0 0.0
    %1603 = vmatprep.subr.mxu0 0.0
    %1604 = vmatpush1.msra.mxu0 0.0
    %1605 = vmatprep.subr.mxu0 0.0
    %1606 = vmatpush1.msra.mxu0 0.0
    %1607 = vmatprep.subr.mxu0 0.0
    %1608 = vmatpush1.msra.mxu0 0.0
    %1609 = vmatprep.subr.mxu0 0.0
    %1610 = vmatpush1.msra.mxu0 0.0
    %1611 = vmatprep.subr.mxu0 0.0
    %1612 = vmatpush1.msra.mxu0 0.0
    %1613 = vmatprep.subr.mxu0 0.0
    %1614 = vmatpush1.msra.mxu0 0.0
    %1615 = vmatprep.subr.mxu0 0.0
    %1616 = vmatpush1.msra.mxu0 0.0
    %1617 = vmatprep.subr.mxu0 0.0
    %1618 = vmatpush1.msra.mxu0 0.0
    %1619 = vmatprep.subr.mxu0 0.0
    %1620 = vmatpush1.msra.mxu0 0.0
    %1621 = vmatprep.subr.mxu0 0.0
    %1622 = vmatpush1.msra.mxu0 0.0
    %1623 = vmatprep.subr.mxu0 0.0
    %1624 = vmatpush1.msra.mxu0 0.0
    %1625 = vmatprep.subr.mxu0 0.0
    %1626 = vmatpush1.msra.mxu0 0.0
    %1627 = vmatprep.subr.mxu0 0.0
    %1628 = vmatpush1.msra.mxu0 0.0
    %1629 = vmatprep.subr.mxu0 0.0
    %1630 = vmatpush1.msra.mxu0 0.0
    %1631 = vmatprep.subr.mxu0 0.0
    %1632 = vmatpush1.msra.mxu0 0.0
    %1633 = vmatprep.subr.mxu0 0.0
    %1634 = vmatpush1.msra.mxu0 0.0
    %1635 = vmatprep.subr.mxu0 0.0
    %1636 = vmatpush1.msra.mxu0 0.0
    %1637 = vmatprep.subr.mxu0 0.0
    %1638 = vmatpush1.msra.mxu0 0.0
    %1639 = vmatprep.subr.mxu0 0.0
    %1640 = vmatpush1.msra.mxu0 0.0
    %1641 = vmatprep.subr.mxu0 0.0
    %1642 = vmatpush1.msra.mxu0 0.0
    %1643 = vmatprep.subr.mxu0 0.0
    %1644 = vmatpush1.msra.mxu0 0.0
    %1645 = vmatprep.subr.mxu0 0.0
    %1646 = vmatpush1.msra.mxu0 0.0
    %1647 = vmatprep.subr.mxu0 0.0
    %1648 = vmatpush1.msra.mxu0 0.0
    %1649 = vmatprep.mubr.f32.mxu0 0.0
    %1650 = vmatmul.mubr.f32.gmra.mrb[0].mxu0 %v1580
    %v1651 = vpop.f32.mrb[0].mxu0
    %v1652 = vadd.f32 %v1577, %v1651
    %v1653 = vpop.f32.mrb[0].mxu0
    %1654 = vmatprep.mubr.f32.mxu0 0.0
    %1655 = vmatmul.mubr.f32.gmra.mrb[0].mxu0 %v1583
    %v1656 = vpop.f32.mrb[0].mxu0
    %v1657 = vadd.f32 %v1577, %v1656
    %v1658 = vpop.f32.mrb[0].mxu0
    %1659 = vdwg.mxu0
    %1660 = vst.msk [vmem:[#allocation9] sm:$0xff] %vm70, %v1652
    %1661 = vst.msk [vmem:[#allocation9 + $0x8] sm:$0xff] %vm70, %v1657
    // Predicated region
    $region42: #{tpu_custom_call.1} parent=1 // pred_check
      _
    $region43: #{tpu_custom_call.1} parent=1 // pred_check_branch
      %1663 = sbr.rel (0) target = $region45
    $region44: #{tpu_custom_call.1} parent=1 // pred_region
      %s1665 = ssub.s32 256, 256
      %1666 = vsyncadd [#allocation5], %s1665
      %s1667 = sshll.u32 [#allocation9], 4
      %s1668 = int_to_ptr.vmem [resolvable:$true] %s1667
      %1673 = dma.vmem_to_hbm [thread:$0]  %s1668, 256, %s7, [#allocation5], 128, 128, 8
    $region45: #{tpu_custom_call.1} parent=1 // pred_fallthru
      _
    // Predicated region
    $region46: #{tpu_custom_call.1} parent=1 // pred_check
      _
    $region47: #{tpu_custom_call.1} parent=1 // pred_check_branch
      %1675 = sbr.rel (0) target = $region49
    $region48: #{tpu_custom_call.1} parent=1 // pred_region
      %1676 = dma.done [#allocation5], 256
    $region49: #{tpu_custom_call.1} parent=1 // pred_fallthru
      _
    %1677 = vsyncpa [#allocation4], 1
    %1678 = vsyncpa [#allocation7], 1
    %1679 = vsyncpa [#allocation5], 1

</llo_original>
